<compile_context>
chip_gen: v7x
topology: tpu7x:2x2x1
jax: 0.10.0
libtpu: 0.0.40
codegen_flags: <defaults>
</compile_context>

<pallas_src>
import math
from functools import partial

import jax
import jax.numpy as jnp
from jax import lax
from jax.experimental import pallas as pl
from jax.experimental.pallas import tpu as pltpu


def _flash_attn_kernel(q_ref, k_ref, v_ref, o_ref, m_ref, l_ref, acc_ref, *, scale):
    # q_ref: (H, tq, E), k_ref: (H, tk, E), v_ref: (H, tk, Dv), o_ref: (tq, H, D)
    # m_ref/l_ref: (H, tq, 1) f32, acc_ref: (H, tq, D) f32
    H = q_ref.shape[0]
    D = o_ref.shape[-1]
    Dv = v_ref.shape[-1]
    fused_rowsum = (Dv == D + 1)   # ones column appended to V in the wrapper

    ki = pl.program_id(2)

    @pl.when(ki == 0)
    def _():
        m_ref[...] = jnp.full_like(m_ref, -jnp.inf)
        l_ref[...] = jnp.zeros_like(l_ref)
        acc_ref[...] = jnp.zeros_like(acc_ref)

    # Static (unrolled) head loop: per-head tiles are clean 2-D (8,128)-layouts.
    for h in range(H):
        # Fold scale into the (tq, E) Q tile (much smaller than the (tq, tk)
        # score tile).  Stays in the native dtype; MXU accumulates in f32.
        q = q_ref[h] * scale
        k = k_ref[h]
        v = v_ref[h]

        # scores[l, s] = sum_e q[l, e] * k[s, e]  (contract E directly, no k.T)
        s = lax.dot_general(
            q, k,
            dimension_numbers=(((1,), (1,)), ((), ())),
            preferred_element_type=jnp.float32,
        )

        # Online-softmax update; m/l/alpha kept in f32.
        m_prev = m_ref[h]
        m_new = jnp.maximum(m_prev, jnp.max(s, axis=-1, keepdims=True))
        alpha = jnp.exp(m_prev - m_new)

        # exp in the compute dtype: bf16 inputs -> bf16 EUP exp feeding the MXU
        # directly; f32 inputs keep full-precision softmax.
        p = jnp.exp((s - m_new).astype(v.dtype))

        pv = jnp.dot(p, v, preferred_element_type=jnp.float32)   # (tq, Dv)

        if fused_rowsum:
            # Row-sum of p came out of the MXU as the last column of pv.
            l_ref[h] = alpha * l_ref[h] + pv[:, D:]
            acc_ref[h] = alpha * acc_ref[h] + pv[:, :D]
        else:
            # D is already a multiple of 128: the extra column would cost a
            # full extra MXU pass, so keep the XLU row-sum here.
            l_ref[h] = alpha * l_ref[h] + jnp.sum(
                p.astype(jnp.float32), axis=-1, keepdims=True)
            acc_ref[h] = alpha * acc_ref[h] + pv
        m_ref[h] = m_new

    # Finalize: one exact normalization of each (tq, D) accumulator, written
    # straight into the native-layout (tq, H, D) output block.
    @pl.when(ki == pl.num_programs(2) - 1)
    def _():
        for h in range(H):
            o_ref[:, h, :] = (acc_ref[h] / l_ref[h]).astype(o_ref.dtype)


def _pick_tile(dim, target, sublane=8):
    """Largest TPU-friendly tile <= target that evenly divides `dim`.

    Only the full dim or divisors that are multiples of 256 / 128 / `sublane`
    are returned, so the resulting BlockSpecs always satisfy the (8,128) rule.
    """
    if dim <= target:
        return dim
    for mult in (256, 128, sublane):
        start = target - (target % mult)
        for t in range(start, 0, -mult):
            if t <= dim and dim % t == 0:
                return t
    # TODO(synk): pad + mask instead of falling back to the full dimension.
    return dim


def full_attention(queries, keys, values, scale=None, *,
                   tq_target=512, tk_target=1024, kv_buffer_count=2):
    """queries: (B,L,H,E), keys: (B,S,H,E), values: (B,S,H,D) -> (B,L,H,D)."""
    B, L, H, E = queries.shape
    _, S, _, D = values.shape
    scale = scale if scale is not None else 1.0 / math.sqrt(E)

    sublane = max(8, 32 // jnp.dtype(queries.dtype).itemsize)
    tq = _pick_tile(L, tq_target, sublane)
    tk = _pick_tile(S, tk_target, sublane)

    # Head-major K/V (and Q): each per-head tile is a contiguous, cleanly
    # (8,128)-tileable 2-D slab.  K/V are re-streamed L/tq times so the
    # transposes amortize; allow_input_fusion lets XLA fold them into the
    # pallas_call operands.
    q = jnp.transpose(queries, (0, 2, 1, 3))   # (B, H, L, E)
    k = jnp.transpose(keys,    (0, 2, 1, 3))   # (B, H, S, E)
    v = jnp.transpose(values,  (0, 2, 1, 3))   # (B, H, S, D)

    # MXU row-sum trick: append a ones column to V (fused with the transpose
    # pass above) so sum_k p[q,k] falls out of the P@V matmul.  Free whenever
    # D % 128 != 0 because the extra column lives in existing lane padding.
    fuse_rowsum = (D % 128) != 0
    if fuse_rowsum:
        v = jnp.concatenate([v, jnp.ones((B, H, S, 1), dtype=v.dtype)], axis=-1)
    Dv = v.shape[-1]

    grid = (B, L // tq, S // tk)

    kv_kwargs = {}
    if kv_buffer_count != 2:
        # Review item: deepen K/V pipelining if profiling shows exposed DMA
        # at small head dims (E = D = 64).
        kv_kwargs = dict(pipeline_mode=pl.Buffered(kv_buffer_count))

    in_specs = [
        # Q block index is independent of ki -> Q stays VMEM-resident over S.
        pl.BlockSpec((None, H, tq, E), lambda b, qi, ki: (b, 0, qi, 0)),
        pl.BlockSpec((None, H, tk, E), lambda b, qi, ki: (b, 0, ki, 0), **kv_kwargs),
        pl.BlockSpec((None, H, tk, Dv), lambda b, qi, ki: (b, 0, ki, 0), **kv_kwargs),
    ]
    # Output written once, directly in the native (B, L, H, D) layout; the
    # block's last two dims equal the full (H, D) extents and its index is
    # independent of ki, so it stays resident until the finalize step.
    out_spec = pl.BlockSpec((None, tq, H, D), lambda b, qi, ki: (b, qi, 0, 0))

    return pl.pallas_call(
        partial(_flash_attn_kernel, scale=scale),
        out_shape=jax.ShapeDtypeStruct((B, L, H, D), queries.dtype),
        grid_spec=pltpu.PrefetchScalarGridSpec(
            num_scalar_prefetch=0,
            grid=grid,
            in_specs=in_specs,
            out_specs=out_spec,
            scratch_shapes=[
                pltpu.VMEM((H, tq, 1), jnp.float32),   # running max m
                pltpu.VMEM((H, tq, 1), jnp.float32),   # running denom l
                pltpu.VMEM((H, tq, D), jnp.float32),   # f32 output accumulator
            ],
        ),
        compiler_params=pltpu.CompilerParams(
            # ki (the reduction axis) must stay last and "arbitrary".
            dimension_semantics=("parallel", "parallel", "arbitrary"),
            vmem_limit_bytes=32 * 1024 * 1024,
            allow_input_fusion=[True, True, True],
        ),
    )(q, k, v)


def _reference(queries, keys, values, scale=None):
    E = queries.shape[-1]
    scale = scale if scale is not None else 1.0 / math.sqrt(E)
    scores = jnp.einsum('blhe,bshe->bhls', queries, keys)
    a = jax.nn.softmax(scale * scores, axis=-1)
    return jnp.einsum('bhls,bshd->blhd', a, values)


if __name__ == "__main__":
    key = jax.random.PRNGKey(0)
    kq, kk, kv = jax.random.split(key, 3)

    B, L, S, H, E, D = 2, 8, 8, 4, 32, 32
    queries = jax.random.normal(kq, (B, L, H, E), dtype=jnp.float32)
    keys    = jax.random.normal(kk, (B, S, H, E), dtype=jnp.float32)
    values  = jax.random.normal(kv, (B, S, H, D), dtype=jnp.float32)

    # f32 path: exact softmax + exact normalization -> tight tolerance.
    out = jax.block_until_ready(full_attention(queries, keys, values))
    ref = _reference(queries, keys, values)
    assert out.shape == (B, L, H, D)
    assert jnp.allclose(out, ref, atol=2e-3, rtol=2e-3), "f32 mismatch vs reference"

    # bf16 path: exercises bf16 MXU matmuls and the bf16 EUP exp (probabilities
    # in bf16 are standard for flash kernels); loose tolerance vs f32 reference.
    qb, kb, vb = (x.astype(jnp.bfloat16) for x in (queries, keys, values))
    out_bf16 = jax.block_until_ready(full_attention(qb, kb, vb))
    ref_bf16 = _reference(qb.astype(jnp.float32), kb.astype(jnp.float32),
                          vb.astype(jnp.float32))
    assert out_bf16.shape == (B, L, H, D)
    assert jnp.allclose(out_bf16.astype(jnp.float32), ref_bf16,
                        atol=5e-2, rtol=5e-2), "bf16 mismatch vs reference"

    print("KERNEL_OK")
</pallas_src>

<mosaic_0001>
module attributes {stable_mosaic.version = 11 : i64} {
  func.func @_flash_attn_kernel(%arg0: i32, %arg1: i32, %arg2: i32, %arg3: memref<1x4x8x32xf32, #tpu.memory_space<vmem>>, %arg4: memref<1x4x8x32xf32, #tpu.memory_space<vmem>>, %arg5: memref<1x4x8x33xf32, #tpu.memory_space<vmem>>, %arg6: memref<1x8x4x32xf32, #tpu.memory_space<vmem>>, %arg7: memref<4x8x1xf32, #tpu.memory_space<vmem>>, %arg8: memref<4x8x1xf32, #tpu.memory_space<vmem>>, %arg9: memref<4x8x32xf32, #tpu.memory_space<vmem>>) attributes {dimension_semantics = [#tpu.dimension_semantics<parallel>, #tpu.dimension_semantics<parallel>, #tpu.dimension_semantics<arbitrary>], iteration_bounds = array<i64: 2, 1, 1>, scalar_prefetch = 0 : i64, scratch_operands = 3 : i64, tpu.core_type = #tpu.core_type<tc>, window_params = [{transform_indices = @transform_0, window_bounds = array<i64: 1, 4, 8, 32>}, {transform_indices = @transform_1, window_bounds = array<i64: 1, 4, 8, 32>}, {transform_indices = @transform_2, window_bounds = array<i64: 1, 4, 8, 33>}, {transform_indices = @transform_3, window_bounds = array<i64: 1, 8, 4, 32>}]} {
    %c0_i32 = arith.constant 0 : i32
    %0 = arith.cmpi eq, %arg2, %c0_i32 : i32
    %1 = arith.extui %0 : i1 to i32
    %c0_i32_0 = arith.constant 0 : i32
    %2 = arith.cmpi ne, %1, %c0_i32_0 : i32
    scf.if %2 {
      %cst_134 = arith.constant 0xFF800000 : f32
      %166 = vector.broadcast %cst_134 : f32 to vector<4x8x1xf32>
      %c0_135 = arith.constant 0 : index
      %c0_136 = arith.constant 0 : index
      %c0_137 = arith.constant 0 : index
      %167 = vector.load %arg7[%c0_135, %c0_136, %c0_137] : memref<4x8x1xf32, #tpu.memory_space<vmem>>, vector<4x8x1xf32>
      tpu.vector_store %arg7[%c0_135, %c0_136, %c0_137], %166 {strides = array<i32>} : memref<4x8x1xf32, #tpu.memory_space<vmem>>, vector<4x8x1xf32>,
      %cst_138 = arith.constant 0.000000e+00 : f32
      %168 = vector.broadcast %cst_138 : f32 to vector<4x8x1xf32>
      %c0_139 = arith.constant 0 : index
      %c0_140 = arith.constant 0 : index
      %c0_141 = arith.constant 0 : index
      %169 = vector.load %arg8[%c0_139, %c0_140, %c0_141] : memref<4x8x1xf32, #tpu.memory_space<vmem>>, vector<4x8x1xf32>
      tpu.vector_store %arg8[%c0_139, %c0_140, %c0_141], %168 {strides = array<i32>} : memref<4x8x1xf32, #tpu.memory_space<vmem>>, vector<4x8x1xf32>,
      %cst_142 = arith.constant 0.000000e+00 : f32
      %170 = vector.broadcast %cst_142 : f32 to vector<4x8x32xf32>
      %c0_143 = arith.constant 0 : index
      %c0_144 = arith.constant 0 : index
      %c0_145 = arith.constant 0 : index
      %171 = vector.load %arg9[%c0_143, %c0_144, %c0_145] : memref<4x8x32xf32, #tpu.memory_space<vmem>>, vector<4x8x32xf32>
      tpu.vector_store %arg9[%c0_143, %c0_144, %c0_145], %170 {strides = array<i32>} : memref<4x8x32xf32, #tpu.memory_space<vmem>>, vector<4x8x32xf32>,
    } else {
    }
    %c0 = arith.constant 0 : index
    %c0_1 = arith.constant 0 : index
    %c0_2 = arith.constant 0 : index
    %c0_3 = arith.constant 0 : index
    %3 = vector.load %arg3[%c0, %c0_1, %c0_2, %c0_3] : memref<1x4x8x32xf32, #tpu.memory_space<vmem>>, vector<1x1x8x32xf32>
    %4 = vector.shape_cast %3 : vector<1x1x8x32xf32> to vector<8x32xf32>
    %cst = arith.constant 0.176776692 : f32
    %5 = vector.broadcast %cst : f32 to vector<8x32xf32>
    %6 = arith.mulf %4, %5 : vector<8x32xf32>
    %c0_4 = arith.constant 0 : index
    %c0_5 = arith.constant 0 : index
    %c0_6 = arith.constant 0 : index
    %c0_7 = arith.constant 0 : index
    %7 = vector.load %arg4[%c0_4, %c0_5, %c0_6, %c0_7] : memref<1x4x8x32xf32, #tpu.memory_space<vmem>>, vector<1x1x8x32xf32>
    %8 = vector.shape_cast %7 : vector<1x1x8x32xf32> to vector<8x32xf32>
    %c0_8 = arith.constant 0 : index
    %c0_9 = arith.constant 0 : index
    %c0_10 = arith.constant 0 : index
    %c0_11 = arith.constant 0 : index
    %9 = vector.load %arg5[%c0_8, %c0_9, %c0_10, %c0_11] : memref<1x4x8x33xf32, #tpu.memory_space<vmem>>, vector<1x1x8x33xf32>
    %10 = vector.shape_cast %9 : vector<1x1x8x33xf32> to vector<8x33xf32>
    %cst_12 = arith.constant dense<0.000000e+00> : vector<8x8xf32>
    %11 = tpu.matmul %6, %8, %cst_12 {dimension_numbers = #tpu.dot_dimension_numbers<[1], [1], [0], [0], [0, 0, 1, 0], [], []>} : vector<8x32xf32>, vector<8x32xf32>, vector<8x8xf32> -> vector<8x8xf32>
    %c0_13 = arith.constant 0 : index
    %c0_14 = arith.constant 0 : index
    %c0_15 = arith.constant 0 : index
    %12 = vector.load %arg7[%c0_13, %c0_14, %c0_15] : memref<4x8x1xf32, #tpu.memory_space<vmem>>, vector<1x8x1xf32>
    %13 = vector.shape_cast %12 : vector<1x8x1xf32> to vector<8x1xf32>
    %cst_16 = arith.constant dense<0xFF800000> : vector<8xf32>
    %14 = vector.multi_reduction <maximumf>, %11, %cst_16 [1] : vector<8x8xf32> to vector<8xf32>
    %15 = vector.shape_cast %14 : vector<8xf32> to vector<8x1xf32>
    %16 = arith.maximumf %13, %15 : vector<8x1xf32>
    %17 = arith.subf %13, %16 : vector<8x1xf32>
    %18 = math.exp %17 : vector<8x1xf32>
    %19 = vector.broadcast %16 : vector<8x1xf32> to vector<8x8xf32>
    %20 = arith.subf %11, %19 : vector<8x8xf32>
    %21 = math.exp %20 : vector<8x8xf32>
    %cst_17 = arith.constant dense<0.000000e+00> : vector<8x33xf32>
    %22 = tpu.matmul %21, %10, %cst_17 {dimension_numbers = #tpu.dot_dimension_numbers<[1], [0], [0], [1], [0, 0, 1, 1], [], []>} : vector<8x8xf32>, vector<8x33xf32>, vector<8x33xf32> -> vector<8x33xf32>
    %c0_18 = arith.constant 0 : index
    %c0_19 = arith.constant 0 : index
    %c0_20 = arith.constant 0 : index
    %23 = vector.load %arg8[%c0_18, %c0_19, %c0_20] : memref<4x8x1xf32, #tpu.memory_space<vmem>>, vector<1x8x1xf32>
    %24 = vector.shape_cast %23 : vector<1x8x1xf32> to vector<8x1xf32>
    %25 = arith.mulf %18, %24 : vector<8x1xf32>
    %26 = vector.extract_strided_slice %22 {offsets = [0, 32], sizes = [8, 1], strides = [1, 1]} : vector<8x33xf32> to vector<8x1xf32>
    %27 = arith.addf %25, %26 : vector<8x1xf32>
    %c0_21 = arith.constant 0 : index
    %c0_22 = arith.constant 0 : index
    %c0_23 = arith.constant 0 : index
    %28 = vector.load %arg8[%c0_21, %c0_22, %c0_23] : memref<4x8x1xf32, #tpu.memory_space<vmem>>, vector<1x8x1xf32>
    %29 = vector.shape_cast %28 : vector<1x8x1xf32> to vector<8x1xf32>
    %30 = vector.shape_cast %27 : vector<8x1xf32> to vector<1x8x1xf32>
    tpu.vector_store %arg8[%c0_21, %c0_22, %c0_23], %30 {strides = array<i32>} : memref<4x8x1xf32, #tpu.memory_space<vmem>>, vector<1x8x1xf32>,
    %c0_24 = arith.constant 0 : index
    %c0_25 = arith.constant 0 : index
    %c0_26 = arith.constant 0 : index
    %31 = vector.load %arg9[%c0_24, %c0_25, %c0_26] : memref<4x8x32xf32, #tpu.memory_space<vmem>>, vector<1x8x32xf32>
    %32 = vector.shape_cast %31 : vector<1x8x32xf32> to vector<8x32xf32>
    %33 = vector.broadcast %18 : vector<8x1xf32> to vector<8x32xf32>
    %34 = arith.mulf %33, %32 : vector<8x32xf32>
    %35 = vector.extract_strided_slice %22 {offsets = [0, 0], sizes = [8, 32], strides = [1, 1]} : vector<8x33xf32> to vector<8x32xf32>
    %36 = arith.addf %34, %35 : vector<8x32xf32>
    %c0_27 = arith.constant 0 : index
    %c0_28 = arith.constant 0 : index
    %c0_29 = arith.constant 0 : index
    %37 = vector.load %arg9[%c0_27, %c0_28, %c0_29] : memref<4x8x32xf32, #tpu.memory_space<vmem>>, vector<1x8x32xf32>
    %38 = vector.shape_cast %37 : vector<1x8x32xf32> to vector<8x32xf32>
    %39 = vector.shape_cast %36 : vector<8x32xf32> to vector<1x8x32xf32>
    tpu.vector_store %arg9[%c0_27, %c0_28, %c0_29], %39 {strides = array<i32>} : memref<4x8x32xf32, #tpu.memory_space<vmem>>, vector<1x8x32xf32>,
    %c0_30 = arith.constant 0 : index
    %c0_31 = arith.constant 0 : index
    %c0_32 = arith.constant 0 : index
    %40 = vector.load %arg7[%c0_30, %c0_31, %c0_32] : memref<4x8x1xf32, #tpu.memory_space<vmem>>, vector<1x8x1xf32>
    %41 = vector.shape_cast %40 : vector<1x8x1xf32> to vector<8x1xf32>
    %42 = vector.shape_cast %16 : vector<8x1xf32> to vector<1x8x1xf32>
    tpu.vector_store %arg7[%c0_30, %c0_31, %c0_32], %42 {strides = array<i32>} : memref<4x8x1xf32, #tpu.memory_space<vmem>>, vector<1x8x1xf32>,
    %c0_33 = arith.constant 0 : index
    %c1 = arith.constant 1 : index
    %c0_34 = arith.constant 0 : index
    %c0_35 = arith.constant 0 : index
    %43 = vector.load %arg3[%c0_33, %c1, %c0_34, %c0_35] : memref<1x4x8x32xf32, #tpu.memory_space<vmem>>, vector<1x1x8x32xf32>
    %44 = vector.shape_cast %43 : vector<1x1x8x32xf32> to vector<8x32xf32>
    %cst_36 = arith.constant 0.176776692 : f32
    %45 = vector.broadcast %cst_36 : f32 to vector<8x32xf32>
    %46 = arith.mulf %44, %45 : vector<8x32xf32>
    %c0_37 = arith.constant 0 : index
    %c1_38 = arith.constant 1 : index
    %c0_39 = arith.constant 0 : index
    %c0_40 = arith.constant 0 : index
    %47 = vector.load %arg4[%c0_37, %c1_38, %c0_39, %c0_40] : memref<1x4x8x32xf32, #tpu.memory_space<vmem>>, vector<1x1x8x32xf32>
    %48 = vector.shape_cast %47 : vector<1x1x8x32xf32> to vector<8x32xf32>
    %c0_41 = arith.constant 0 : index
    %c1_42 = arith.constant 1 : index
    %c0_43 = arith.constant 0 : index
    %c0_44 = arith.constant 0 : index
    %49 = vector.load %arg5[%c0_41, %c1_42, %c0_43, %c0_44] : memref<1x4x8x33xf32, #tpu.memory_space<vmem>>, vector<1x1x8x33xf32>
    %50 = vector.shape_cast %49 : vector<1x1x8x33xf32> to vector<8x33xf32>
    %cst_45 = arith.constant dense<0.000000e+00> : vector<8x8xf32>
    %51 = tpu.matmul %46, %48, %cst_45 {dimension_numbers = #tpu.dot_dimension_numbers<[1], [1], [0], [0], [0, 0, 1, 0], [], []>} : vector<8x32xf32>, vector<8x32xf32>, vector<8x8xf32> -> vector<8x8xf32>
    %c1_46 = arith.constant 1 : index
    %c0_47 = arith.constant 0 : index
    %c0_48 = arith.constant 0 : index
    %52 = vector.load %arg7[%c1_46, %c0_47, %c0_48] : memref<4x8x1xf32, #tpu.memory_space<vmem>>, vector<1x8x1xf32>
    %53 = vector.shape_cast %52 : vector<1x8x1xf32> to vector<8x1xf32>
    %cst_49 = arith.constant dense<0xFF800000> : vector<8xf32>
    %54 = vector.multi_reduction <maximumf>, %51, %cst_49 [1] : vector<8x8xf32> to vector<8xf32>
    %55 = vector.shape_cast %54 : vector<8xf32> to vector<8x1xf32>
    %56 = arith.maximumf %53, %55 : vector<8x1xf32>
    %57 = arith.subf %53, %56 : vector<8x1xf32>
    %58 = math.exp %57 : vector<8x1xf32>
    %59 = vector.broadcast %56 : vector<8x1xf32> to vector<8x8xf32>
    %60 = arith.subf %51, %59 : vector<8x8xf32>
    %61 = math.exp %60 : vector<8x8xf32>
    %cst_50 = arith.constant dense<0.000000e+00> : vector<8x33xf32>
    %62 = tpu.matmul %61, %50, %cst_50 {dimension_numbers = #tpu.dot_dimension_numbers<[1], [0], [0], [1], [0, 0, 1, 1], [], []>} : vector<8x8xf32>, vector<8x33xf32>, vector<8x33xf32> -> vector<8x33xf32>
    %c1_51 = arith.constant 1 : index
    %c0_52 = arith.constant 0 : index
    %c0_53 = arith.constant 0 : index
    %63 = vector.load %arg8[%c1_51, %c0_52, %c0_53] : memref<4x8x1xf32, #tpu.memory_space<vmem>>, vector<1x8x1xf32>
    %64 = vector.shape_cast %63 : vector<1x8x1xf32> to vector<8x1xf32>
    %65 = arith.mulf %58, %64 : vector<8x1xf32>
    %66 = vector.extract_strided_slice %62 {offsets = [0, 32], sizes = [8, 1], strides = [1, 1]} : vector<8x33xf32> to vector<8x1xf32>
    %67 = arith.addf %65, %66 : vector<8x1xf32>
    %c1_54 = arith.constant 1 : index
    %c0_55 = arith.constant 0 : index
    %c0_56 = arith.constant 0 : index
    %68 = vector.load %arg8[%c1_54, %c0_55, %c0_56] : memref<4x8x1xf32, #tpu.memory_space<vmem>>, vector<1x8x1xf32>
    %69 = vector.shape_cast %68 : vector<1x8x1xf32> to vector<8x1xf32>
    %70 = vector.shape_cast %67 : vector<8x1xf32> to vector<1x8x1xf32>
    tpu.vector_store %arg8[%c1_54, %c0_55, %c0_56], %70 {strides = array<i32>} : memref<4x8x1xf32, #tpu.memory_space<vmem>>, vector<1x8x1xf32>,
    %c1_57 = arith.constant 1 : index
    %c0_58 = arith.constant 0 : index
    %c0_59 = arith.constant 0 : index
    %71 = vector.load %arg9[%c1_57, %c0_58, %c0_59] : memref<4x8x32xf32, #tpu.memory_space<vmem>>, vector<1x8x32xf32>
    %72 = vector.shape_cast %71 : vector<1x8x32xf32> to vector<8x32xf32>
    %73 = vector.broadcast %58 : vector<8x1xf32> to vector<8x32xf32>
    %74 = arith.mulf %73, %72 : vector<8x32xf32>
    %75 = vector.extract_strided_slice %62 {offsets = [0, 0], sizes = [8, 32], strides = [1, 1]} : vector<8x33xf32> to vector<8x32xf32>
    %76 = arith.addf %74, %75 : vector<8x32xf32>
    %c1_60 = arith.constant 1 : index
    %c0_61 = arith.constant 0 : index
    %c0_62 = arith.constant 0 : index
    %77 = vector.load %arg9[%c1_60, %c0_61, %c0_62] : memref<4x8x32xf32, #tpu.memory_space<vmem>>, vector<1x8x32xf32>
    %78 = vector.shape_cast %77 : vector<1x8x32xf32> to vector<8x32xf32>
    %79 = vector.shape_cast %76 : vector<8x32xf32> to vector<1x8x32xf32>
    tpu.vector_store %arg9[%c1_60, %c0_61, %c0_62], %79 {strides = array<i32>} : memref<4x8x32xf32, #tpu.memory_space<vmem>>, vector<1x8x32xf32>,
    %c1_63 = arith.constant 1 : index
    %c0_64 = arith.constant 0 : index
    %c0_65 = arith.constant 0 : index
    %80 = vector.load %arg7[%c1_63, %c0_64, %c0_65] : memref<4x8x1xf32, #tpu.memory_space<vmem>>, vector<1x8x1xf32>
    %81 = vector.shape_cast %80 : vector<1x8x1xf32> to vector<8x1xf32>
    %82 = vector.shape_cast %56 : vector<8x1xf32> to vector<1x8x1xf32>
    tpu.vector_store %arg7[%c1_63, %c0_64, %c0_65], %82 {strides = array<i32>} : memref<4x8x1xf32, #tpu.memory_space<vmem>>, vector<1x8x1xf32>,
    %c0_66 = arith.constant 0 : index
    %c2 = arith.constant 2 : index
    %c0_67 = arith.constant 0 : index
    %c0_68 = arith.constant 0 : index
    %83 = vector.load %arg3[%c0_66, %c2, %c0_67, %c0_68] : memref<1x4x8x32xf32, #tpu.memory_space<vmem>>, vector<1x1x8x32xf32>
    %84 = vector.shape_cast %83 : vector<1x1x8x32xf32> to vector<8x32xf32>
    %cst_69 = arith.constant 0.176776692 : f32
    %85 = vector.broadcast %cst_69 : f32 to vector<8x32xf32>
    %86 = arith.mulf %84, %85 : vector<8x32xf32>
    %c0_70 = arith.constant 0 : index
    %c2_71 = arith.constant 2 : index
    %c0_72 = arith.constant 0 : index
    %c0_73 = arith.constant 0 : index
    %87 = vector.load %arg4[%c0_70, %c2_71, %c0_72, %c0_73] : memref<1x4x8x32xf32, #tpu.memory_space<vmem>>, vector<1x1x8x32xf32>
    %88 = vector.shape_cast %87 : vector<1x1x8x32xf32> to vector<8x32xf32>
    %c0_74 = arith.constant 0 : index
    %c2_75 = arith.constant 2 : index
    %c0_76 = arith.constant 0 : index
    %c0_77 = arith.constant 0 : index
    %89 = vector.load %arg5[%c0_74, %c2_75, %c0_76, %c0_77] : memref<1x4x8x33xf32, #tpu.memory_space<vmem>>, vector<1x1x8x33xf32>
    %90 = vector.shape_cast %89 : vector<1x1x8x33xf32> to vector<8x33xf32>
    %cst_78 = arith.constant dense<0.000000e+00> : vector<8x8xf32>
    %91 = tpu.matmul %86, %88, %cst_78 {dimension_numbers = #tpu.dot_dimension_numbers<[1], [1], [0], [0], [0, 0, 1, 0], [], []>} : vector<8x32xf32>, vector<8x32xf32>, vector<8x8xf32> -> vector<8x8xf32>
    %c2_79 = arith.constant 2 : index
    %c0_80 = arith.constant 0 : index
    %c0_81 = arith.constant 0 : index
    %92 = vector.load %arg7[%c2_79, %c0_80, %c0_81] : memref<4x8x1xf32, #tpu.memory_space<vmem>>, vector<1x8x1xf32>
    %93 = vector.shape_cast %92 : vector<1x8x1xf32> to vector<8x1xf32>
    %cst_82 = arith.constant dense<0xFF800000> : vector<8xf32>
    %94 = vector.multi_reduction <maximumf>, %91, %cst_82 [1] : vector<8x8xf32> to vector<8xf32>
    %95 = vector.shape_cast %94 : vector<8xf32> to vector<8x1xf32>
    %96 = arith.maximumf %93, %95 : vector<8x1xf32>
    %97 = arith.subf %93, %96 : vector<8x1xf32>
    %98 = math.exp %97 : vector<8x1xf32>
    %99 = vector.broadcast %96 : vector<8x1xf32> to vector<8x8xf32>
    %100 = arith.subf %91, %99 : vector<8x8xf32>
    %101 = math.exp %100 : vector<8x8xf32>
    %cst_83 = arith.constant dense<0.000000e+00> : vector<8x33xf32>
    %102 = tpu.matmul %101, %90, %cst_83 {dimension_numbers = #tpu.dot_dimension_numbers<[1], [0], [0], [1], [0, 0, 1, 1], [], []>} : vector<8x8xf32>, vector<8x33xf32>, vector<8x33xf32> -> vector<8x33xf32>
    %c2_84 = arith.constant 2 : index
    %c0_85 = arith.constant 0 : index
    %c0_86 = arith.constant 0 : index
    %103 = vector.load %arg8[%c2_84, %c0_85, %c0_86] : memref<4x8x1xf32, #tpu.memory_space<vmem>>, vector<1x8x1xf32>
    %104 = vector.shape_cast %103 : vector<1x8x1xf32> to vector<8x1xf32>
    %105 = arith.mulf %98, %104 : vector<8x1xf32>
    %106 = vector.extract_strided_slice %102 {offsets = [0, 32], sizes = [8, 1], strides = [1, 1]} : vector<8x33xf32> to vector<8x1xf32>
    %107 = arith.addf %105, %106 : vector<8x1xf32>
    %c2_87 = arith.constant 2 : index
    %c0_88 = arith.constant 0 : index
    %c0_89 = arith.constant 0 : index
    %108 = vector.load %arg8[%c2_87, %c0_88, %c0_89] : memref<4x8x1xf32, #tpu.memory_space<vmem>>, vector<1x8x1xf32>
    %109 = vector.shape_cast %108 : vector<1x8x1xf32> to vector<8x1xf32>
    %110 = vector.shape_cast %107 : vector<8x1xf32> to vector<1x8x1xf32>
    tpu.vector_store %arg8[%c2_87, %c0_88, %c0_89], %110 {strides = array<i32>} : memref<4x8x1xf32, #tpu.memory_space<vmem>>, vector<1x8x1xf32>,
    %c2_90 = arith.constant 2 : index
    %c0_91 = arith.constant 0 : index
    %c0_92 = arith.constant 0 : index
    %111 = vector.load %arg9[%c2_90, %c0_91, %c0_92] : memref<4x8x32xf32, #tpu.memory_space<vmem>>, vector<1x8x32xf32>
    %112 = vector.shape_cast %111 : vector<1x8x32xf32> to vector<8x32xf32>
    %113 = vector.broadcast %98 : vector<8x1xf32> to vector<8x32xf32>
    %114 = arith.mulf %113, %112 : vector<8x32xf32>
    %115 = vector.extract_strided_slice %102 {offsets = [0, 0], sizes = [8, 32], strides = [1, 1]} : vector<8x33xf32> to vector<8x32xf32>
    %116 = arith.addf %114, %115 : vector<8x32xf32>
    %c2_93 = arith.constant 2 : index
    %c0_94 = arith.constant 0 : index
    %c0_95 = arith.constant 0 : index
    %117 = vector.load %arg9[%c2_93, %c0_94, %c0_95] : memref<4x8x32xf32, #tpu.memory_space<vmem>>, vector<1x8x32xf32>
    %118 = vector.shape_cast %117 : vector<1x8x32xf32> to vector<8x32xf32>
    %119 = vector.shape_cast %116 : vector<8x32xf32> to vector<1x8x32xf32>
    tpu.vector_store %arg9[%c2_93, %c0_94, %c0_95], %119 {strides = array<i32>} : memref<4x8x32xf32, #tpu.memory_space<vmem>>, vector<1x8x32xf32>,
    %c2_96 = arith.constant 2 : index
    %c0_97 = arith.constant 0 : index
    %c0_98 = arith.constant 0 : index
    %120 = vector.load %arg7[%c2_96, %c0_97, %c0_98] : memref<4x8x1xf32, #tpu.memory_space<vmem>>, vector<1x8x1xf32>
    %121 = vector.shape_cast %120 : vector<1x8x1xf32> to vector<8x1xf32>
    %122 = vector.shape_cast %96 : vector<8x1xf32> to vector<1x8x1xf32>
    tpu.vector_store %arg7[%c2_96, %c0_97, %c0_98], %122 {strides = array<i32>} : memref<4x8x1xf32, #tpu.memory_space<vmem>>, vector<1x8x1xf32>,
    %c0_99 = arith.constant 0 : index
    %c3 = arith.constant 3 : index
    %c0_100 = arith.constant 0 : index
    %c0_101 = arith.constant 0 : index
    %123 = vector.load %arg3[%c0_99, %c3, %c0_100, %c0_101] : memref<1x4x8x32xf32, #tpu.memory_space<vmem>>, vector<1x1x8x32xf32>
    %124 = vector.shape_cast %123 : vector<1x1x8x32xf32> to vector<8x32xf32>
    %cst_102 = arith.constant 0.176776692 : f32
    %125 = vector.broadcast %cst_102 : f32 to vector<8x32xf32>
    %126 = arith.mulf %124, %125 : vector<8x32xf32>
    %c0_103 = arith.constant 0 : index
    %c3_104 = arith.constant 3 : index
    %c0_105 = arith.constant 0 : index
    %c0_106 = arith.constant 0 : index
    %127 = vector.load %arg4[%c0_103, %c3_104, %c0_105, %c0_106] : memref<1x4x8x32xf32, #tpu.memory_space<vmem>>, vector<1x1x8x32xf32>
    %128 = vector.shape_cast %127 : vector<1x1x8x32xf32> to vector<8x32xf32>
    %c0_107 = arith.constant 0 : index
    %c3_108 = arith.constant 3 : index
    %c0_109 = arith.constant 0 : index
    %c0_110 = arith.constant 0 : index
    %129 = vector.load %arg5[%c0_107, %c3_108, %c0_109, %c0_110] : memref<1x4x8x33xf32, #tpu.memory_space<vmem>>, vector<1x1x8x33xf32>
    %130 = vector.shape_cast %129 : vector<1x1x8x33xf32> to vector<8x33xf32>
    %cst_111 = arith.constant dense<0.000000e+00> : vector<8x8xf32>
    %131 = tpu.matmul %126, %128, %cst_111 {dimension_numbers = #tpu.dot_dimension_numbers<[1], [1], [0], [0], [0, 0, 1, 0], [], []>} : vector<8x32xf32>, vector<8x32xf32>, vector<8x8xf32> -> vector<8x8xf32>
    %c3_112 = arith.constant 3 : index
    %c0_113 = arith.constant 0 : index
    %c0_114 = arith.constant 0 : index
    %132 = vector.load %arg7[%c3_112, %c0_113, %c0_114] : memref<4x8x1xf32, #tpu.memory_space<vmem>>, vector<1x8x1xf32>
    %133 = vector.shape_cast %132 : vector<1x8x1xf32> to vector<8x1xf32>
    %cst_115 = arith.constant dense<0xFF800000> : vector<8xf32>
    %134 = vector.multi_reduction <maximumf>, %131, %cst_115 [1] : vector<8x8xf32> to vector<8xf32>
    %135 = vector.shape_cast %134 : vector<8xf32> to vector<8x1xf32>
    %136 = arith.maximumf %133, %135 : vector<8x1xf32>
    %137 = arith.subf %133, %136 : vector<8x1xf32>
    %138 = math.exp %137 : vector<8x1xf32>
    %139 = vector.broadcast %136 : vector<8x1xf32> to vector<8x8xf32>
    %140 = arith.subf %131, %139 : vector<8x8xf32>
    %141 = math.exp %140 : vector<8x8xf32>
    %cst_116 = arith.constant dense<0.000000e+00> : vector<8x33xf32>
    %142 = tpu.matmul %141, %130, %cst_116 {dimension_numbers = #tpu.dot_dimension_numbers<[1], [0], [0], [1], [0, 0, 1, 1], [], []>} : vector<8x8xf32>, vector<8x33xf32>, vector<8x33xf32> -> vector<8x33xf32>
    %c3_117 = arith.constant 3 : index
    %c0_118 = arith.constant 0 : index
    %c0_119 = arith.constant 0 : index
    %143 = vector.load %arg8[%c3_117, %c0_118, %c0_119] : memref<4x8x1xf32, #tpu.memory_space<vmem>>, vector<1x8x1xf32>
    %144 = vector.shape_cast %143 : vector<1x8x1xf32> to vector<8x1xf32>
    %145 = arith.mulf %138, %144 : vector<8x1xf32>
    %146 = vector.extract_strided_slice %142 {offsets = [0, 32], sizes = [8, 1], strides = [1, 1]} : vector<8x33xf32> to vector<8x1xf32>
    %147 = arith.addf %145, %146 : vector<8x1xf32>
    %c3_120 = arith.constant 3 : index
    %c0_121 = arith.constant 0 : index
    %c0_122 = arith.constant 0 : index
    %148 = vector.load %arg8[%c3_120, %c0_121, %c0_122] : memref<4x8x1xf32, #tpu.memory_space<vmem>>, vector<1x8x1xf32>
    %149 = vector.shape_cast %148 : vector<1x8x1xf32> to vector<8x1xf32>
    %150 = vector.shape_cast %147 : vector<8x1xf32> to vector<1x8x1xf32>
    tpu.vector_store %arg8[%c3_120, %c0_121, %c0_122], %150 {strides = array<i32>} : memref<4x8x1xf32, #tpu.memory_space<vmem>>, vector<1x8x1xf32>,
    %c3_123 = arith.constant 3 : index
    %c0_124 = arith.constant 0 : index
    %c0_125 = arith.constant 0 : index
    %151 = vector.load %arg9[%c3_123, %c0_124, %c0_125] : memref<4x8x32xf32, #tpu.memory_space<vmem>>, vector<1x8x32xf32>
    %152 = vector.shape_cast %151 : vector<1x8x32xf32> to vector<8x32xf32>
    %153 = vector.broadcast %138 : vector<8x1xf32> to vector<8x32xf32>
    %154 = arith.mulf %153, %152 : vector<8x32xf32>
    %155 = vector.extract_strided_slice %142 {offsets = [0, 0], sizes = [8, 32], strides = [1, 1]} : vector<8x33xf32> to vector<8x32xf32>
    %156 = arith.addf %154, %155 : vector<8x32xf32>
    %c3_126 = arith.constant 3 : index
    %c0_127 = arith.constant 0 : index
    %c0_128 = arith.constant 0 : index
    %157 = vector.load %arg9[%c3_126, %c0_127, %c0_128] : memref<4x8x32xf32, #tpu.memory_space<vmem>>, vector<1x8x32xf32>
    %158 = vector.shape_cast %157 : vector<1x8x32xf32> to vector<8x32xf32>
    %159 = vector.shape_cast %156 : vector<8x32xf32> to vector<1x8x32xf32>
    tpu.vector_store %arg9[%c3_126, %c0_127, %c0_128], %159 {strides = array<i32>} : memref<4x8x32xf32, #tpu.memory_space<vmem>>, vector<1x8x32xf32>,
    %c3_129 = arith.constant 3 : index
    %c0_130 = arith.constant 0 : index
    %c0_131 = arith.constant 0 : index
    %160 = vector.load %arg7[%c3_129, %c0_130, %c0_131] : memref<4x8x1xf32, #tpu.memory_space<vmem>>, vector<1x8x1xf32>
    %161 = vector.shape_cast %160 : vector<1x8x1xf32> to vector<8x1xf32>
    %162 = vector.shape_cast %136 : vector<8x1xf32> to vector<1x8x1xf32>
    tpu.vector_store %arg7[%c3_129, %c0_130, %c0_131], %162 {strides = array<i32>} : memref<4x8x1xf32, #tpu.memory_space<vmem>>, vector<1x8x1xf32>,
    %c0_i32_132 = arith.constant 0 : i32
    %163 = arith.cmpi eq, %arg2, %c0_i32_132 : i32
    %164 = arith.extui %163 : i1 to i32
    %c0_i32_133 = arith.constant 0 : i32
    %165 = arith.cmpi ne, %164, %c0_i32_133 : i32
    scf.if %165 {
      %c0_134 = arith.constant 0 : index
      %c0_135 = arith.constant 0 : index
      %c0_136 = arith.constant 0 : index
      %166 = vector.load %arg9[%c0_134, %c0_135, %c0_136] : memref<4x8x32xf32, #tpu.memory_space<vmem>>, vector<1x8x32xf32>
      %167 = vector.shape_cast %166 : vector<1x8x32xf32> to vector<8x32xf32>
      %c0_137 = arith.constant 0 : index
      %c0_138 = arith.constant 0 : index
      %c0_139 = arith.constant 0 : index
      %168 = vector.load %arg8[%c0_137, %c0_138, %c0_139] : memref<4x8x1xf32, #tpu.memory_space<vmem>>, vector<1x8x1xf32>
      %169 = vector.shape_cast %168 : vector<1x8x1xf32> to vector<8x1xf32>
      %170 = vector.broadcast %169 : vector<8x1xf32> to vector<8x32xf32>
      %171 = arith.divf %167, %170 : vector<8x32xf32>
      %c0_140 = arith.constant 0 : index
      %c0_141 = arith.constant 0 : index
      %c0_142 = arith.constant 0 : index
      %c0_143 = arith.constant 0 : index
      %172 = vector.load %arg6[%c0_140, %c0_141, %c0_142, %c0_143] : memref<1x8x4x32xf32, #tpu.memory_space<vmem>>, vector<1x8x1x32xf32>
      %173 = vector.shape_cast %172 : vector<1x8x1x32xf32> to vector<8x32xf32>
      %174 = vector.shape_cast %171 : vector<8x32xf32> to vector<1x8x1x32xf32>
      tpu.vector_store %arg6[%c0_140, %c0_141, %c0_142, %c0_143], %174 {strides = array<i32>} : memref<1x8x4x32xf32, #tpu.memory_space<vmem>>, vector<1x8x1x32xf32>,
      %c1_144 = arith.constant 1 : index
      %c0_145 = arith.constant 0 : index
      %c0_146 = arith.constant 0 : index
      %175 = vector.load %arg9[%c1_144, %c0_145, %c0_146] : memref<4x8x32xf32, #tpu.memory_space<vmem>>, vector<1x8x32xf32>
      %176 = vector.shape_cast %175 : vector<1x8x32xf32> to vector<8x32xf32>
      %c1_147 = arith.constant 1 : index
      %c0_148 = arith.constant 0 : index
      %c0_149 = arith.constant 0 : index
      %177 = vector.load %arg8[%c1_147, %c0_148, %c0_149] : memref<4x8x1xf32, #tpu.memory_space<vmem>>, vector<1x8x1xf32>
      %178 = vector.shape_cast %177 : vector<1x8x1xf32> to vector<8x1xf32>
      %179 = vector.broadcast %178 : vector<8x1xf32> to vector<8x32xf32>
      %180 = arith.divf %176, %179 : vector<8x32xf32>
      %c0_150 = arith.constant 0 : index
      %c0_151 = arith.constant 0 : index
      %c1_152 = arith.constant 1 : index
      %c0_153 = arith.constant 0 : index
      %181 = vector.load %arg6[%c0_150, %c0_151, %c1_152, %c0_153] : memref<1x8x4x32xf32, #tpu.memory_space<vmem>>, vector<1x8x1x32xf32>
      %182 = vector.shape_cast %181 : vector<1x8x1x32xf32> to vector<8x32xf32>
      %183 = vector.shape_cast %180 : vector<8x32xf32> to vector<1x8x1x32xf32>
      tpu.vector_store %arg6[%c0_150, %c0_151, %c1_152, %c0_153], %183 {strides = array<i32>} : memref<1x8x4x32xf32, #tpu.memory_space<vmem>>, vector<1x8x1x32xf32>,
      %c2_154 = arith.constant 2 : index
      %c0_155 = arith.constant 0 : index
      %c0_156 = arith.constant 0 : index
      %184 = vector.load %arg9[%c2_154, %c0_155, %c0_156] : memref<4x8x32xf32, #tpu.memory_space<vmem>>, vector<1x8x32xf32>
      %185 = vector.shape_cast %184 : vector<1x8x32xf32> to vector<8x32xf32>
      %c2_157 = arith.constant 2 : index
      %c0_158 = arith.constant 0 : index
      %c0_159 = arith.constant 0 : index
      %186 = vector.load %arg8[%c2_157, %c0_158, %c0_159] : memref<4x8x1xf32, #tpu.memory_space<vmem>>, vector<1x8x1xf32>
      %187 = vector.shape_cast %186 : vector<1x8x1xf32> to vector<8x1xf32>
      %188 = vector.broadcast %187 : vector<8x1xf32> to vector<8x32xf32>
      %189 = arith.divf %185, %188 : vector<8x32xf32>
      %c0_160 = arith.constant 0 : index
      %c0_161 = arith.constant 0 : index
      %c2_162 = arith.constant 2 : index
      %c0_163 = arith.constant 0 : index
      %190 = vector.load %arg6[%c0_160, %c0_161, %c2_162, %c0_163] : memref<1x8x4x32xf32, #tpu.memory_space<vmem>>, vector<1x8x1x32xf32>
      %191 = vector.shape_cast %190 : vector<1x8x1x32xf32> to vector<8x32xf32>
      %192 = vector.shape_cast %189 : vector<8x32xf32> to vector<1x8x1x32xf32>
      tpu.vector_store %arg6[%c0_160, %c0_161, %c2_162, %c0_163], %192 {strides = array<i32>} : memref<1x8x4x32xf32, #tpu.memory_space<vmem>>, vector<1x8x1x32xf32>,
      %c3_164 = arith.constant 3 : index
      %c0_165 = arith.constant 0 : index
      %c0_166 = arith.constant 0 : index
      %193 = vector.load %arg9[%c3_164, %c0_165, %c0_166] : memref<4x8x32xf32, #tpu.memory_space<vmem>>, vector<1x8x32xf32>
      %194 = vector.shape_cast %193 : vector<1x8x32xf32> to vector<8x32xf32>
      %c3_167 = arith.constant 3 : index
      %c0_168 = arith.constant 0 : index
      %c0_169 = arith.constant 0 : index
      %195 = vector.load %arg8[%c3_167, %c0_168, %c0_169] : memref<4x8x1xf32, #tpu.memory_space<vmem>>, vector<1x8x1xf32>
      %196 = vector.shape_cast %195 : vector<1x8x1xf32> to vector<8x1xf32>
      %197 = vector.broadcast %196 : vector<8x1xf32> to vector<8x32xf32>
      %198 = arith.divf %194, %197 : vector<8x32xf32>
      %c0_170 = arith.constant 0 : index
      %c0_171 = arith.constant 0 : index
      %c3_172 = arith.constant 3 : index
      %c0_173 = arith.constant 0 : index
      %199 = vector.load %arg6[%c0_170, %c0_171, %c3_172, %c0_173] : memref<1x8x4x32xf32, #tpu.memory_space<vmem>>, vector<1x8x1x32xf32>
      %200 = vector.shape_cast %199 : vector<1x8x1x32xf32> to vector<8x32xf32>
      %201 = vector.shape_cast %198 : vector<8x32xf32> to vector<1x8x1x32xf32>
      tpu.vector_store %arg6[%c0_170, %c0_171, %c3_172, %c0_173], %201 {strides = array<i32>} : memref<1x8x4x32xf32, #tpu.memory_space<vmem>>, vector<1x8x1x32xf32>,
    } else {
    }
    return
  }
  func.func @transform_0(%arg0: i32, %arg1: i32, %arg2: i32) -> (i32, i32, i32, i32) {
    %c0_i32 = arith.constant 0 : i32
    %c0_i32_0 = arith.constant 0 : i32
    %c0_i32_1 = arith.constant 0 : i32
    return %arg0, %c0_i32, %arg1, %c0_i32_0 : i32, i32, i32, i32
  }
  func.func @transform_1(%arg0: i32, %arg1: i32, %arg2: i32) -> (i32, i32, i32, i32) {
    %c0_i32 = arith.constant 0 : i32
    %c0_i32_0 = arith.constant 0 : i32
    %c0_i32_1 = arith.constant 0 : i32
    return %arg0, %c0_i32, %arg2, %c0_i32_0 : i32, i32, i32, i32
  }
  func.func @transform_2(%arg0: i32, %arg1: i32, %arg2: i32) -> (i32, i32, i32, i32) {
    %c0_i32 = arith.constant 0 : i32
    %c0_i32_0 = arith.constant 0 : i32
    %c0_i32_1 = arith.constant 0 : i32
    return %arg0, %c0_i32, %arg2, %c0_i32_0 : i32, i32, i32, i32
  }
  func.func @transform_3(%arg0: i32, %arg1: i32, %arg2: i32) -> (i32, i32, i32, i32) {
    %c0_i32 = arith.constant 0 : i32
    %c0_i32_0 = arith.constant 0 : i32
    %c0_i32_1 = arith.constant 0 : i32
    return %arg0, %arg1, %c0_i32, %c0_i32_0 : i32, i32, i32, i32
  }
}

</mosaic_0001>

<llo_original>
// kernel: tpu_custom_call.1
$region0: #{tpu_custom_call.1}
  #allocation0 [shape = 'u32[]', space=smem, size = 0x4, offset = 0x4, fixed_abs, tag = 'smem constant byte address 0x4 - core index']
  #allocation1 [shape = 'u32[144,128]{1,0:T(1,128)}', space=vmem, size = 0x12000, scoped, tag = 'internal scratch']
  #allocation2 [shape = 'f32[4,8,1]{2,1,0:T(8,128)}', space=vmem, size = 0x4000, scoped, tag = 'scratch operand']
  #allocation3 [shape = 'f32[4,8,1]{2,1,0:T(8,128)}', space=vmem, size = 0x4000, scoped, tag = 'scratch operand']
  #allocation4 [shape = 'f32[4,8,32]{2,1,0:T(8,128)}', space=vmem, size = 0x4000, scoped, tag = 'scratch operand']
  %s0 = inlined_call_operand.hbm [shape: f32[2,4,8,32], index: 0, kind: input, shape index: {}]
  %s1 = inlined_call_operand.hbm [shape: f32[2,4,8,32], index: 1, kind: input, shape index: {}]
  %s2 = inlined_call_operand.hbm [shape: f32[2,4,8,33], index: 2, kind: input, shape index: {}]
  %s3 = inlined_call_operand.hbm [shape: f32[2,8,4,32], index: 3, kind: output, shape index: {}]
  %s4 = sld [smem:[#allocation0]]
  $region65: #{tpu_custom_call.1} parent=0
    _
  %s6 = ssub.s32 1, %s4
  %s7 = scalar_select 0, %s6, %s4
  $region1: #{tpu_custom_call.1} parent=0
    #allocation5 [shape = 'u8[32768]{0}', space=vmem, size = 0x8000, scoped, tag = 'input window, operand 0']
    #allocation6 [shape = 's32[2]{0}', space=sflag, size = 0x8, scoped, tag = 'scoped memory for tpu_custom_call.1']
    #allocation7 [shape = 's32[2]{0}', space=sflag, size = 0x8, scoped, tag = 'scoped memory for tpu_custom_call.1']
    #allocation8 [shape = 'u8[32768]{0}', space=vmem, size = 0x8000, scoped, tag = 'input window, operand 1']
    #allocation9 [shape = 's32[2]{0}', space=sflag, size = 0x8, scoped, tag = 'scoped memory for tpu_custom_call.1']
    #allocation10 [shape = 'u8[32768]{0}', space=vmem, size = 0x8000, scoped, tag = 'input window, operand 2']
    #allocation11 [shape = 'u8[32768]{0}', space=vmem, size = 0x8000, scoped, tag = 'output window, operand 0']
    %8 = vsyncpa [#allocation6], 0
    %s9 = scalar_lea.sflag [#allocation6], 1
    %10 = vsyncpa %s9, 0
    %11 = vsyncpa [#allocation9], 0
    %s12 = scalar_lea.sflag [#allocation9], 1
    %13 = vsyncpa %s12, 0
    %14 = vsyncpa [#allocation7], 0
    %s15 = scalar_lea.sflag [#allocation7], 1
    %16 = vsyncpa %s15, 0
    loop: start=0, step=1, limit=4
    $region2: #{tpu_custom_call.1} parent=1 // loop_pre_header
      _
    $region3: #{tpu_custom_call.1} parent=1 // loop_header
      %s18 = sphi 0, %s22
      %p19 = scmp.ge.s32.totalorder %s18, 4
      %s25 = sphi 0, %s44
      %s26 = sphi 0, %s40
      %s27 = sphi 0, %s36
      %s28 = sphi 0, %s25
      %s29 = sphi 0, %s26
      %s30 = sphi 0, %s27
      %s31 = sphi 0, %s28
      %s32 = sphi 0, %s29
      %s33 = sphi 0, %s30
      %s49 = sphi 0, %s51
      %s52 = sphi 0, %s49
      %s53 = sphi 0, %s52
      %s69 = sphi 0, %s53
      %s77 = sphi 0, %s79
      %s80 = sphi 0, %s77
      %s81 = sphi 0, %s80
      %s97 = sphi 0, %s81
      %s105 = sphi 0, %s107
      %s108 = sphi 0, %s105
      %s109 = sphi 0, %s108
      %s125 = sphi 0, %s109
      %s133 = sphi 0, %s135
      %s136 = sphi 0, %s133
      %s137 = sphi 0, %s136
      %s153 = sphi 0, %s137
    $region4: #{tpu_custom_call.1} parent=1 // loop_header_branch
      %21 = sbr.rel (%p19) target = $region8
    $region5: #{tpu_custom_call.1} parent=1 // loop_body
      %s23 = ssub.s32 %s18, 1
      %s24 = ssub.s32 %s18, 2
      %s34 = sadd.s32 1, %s27
      %p35 = scmp.ge.s32.totalorder %s34, 1
      %s36 = scalar_select %p35, 0, %s34
      %s37 = sadd.s32 1, %s26
      %s38 = scalar_select %p35, %s37, %s26
      %p39 = scmp.ge.s32.totalorder %s38, 1
      %s40 = scalar_select %p39, 0, %s38
      %s41 = sadd.s32 1, %s25
      %s42 = scalar_select %p39, %s41, %s25
      %p43 = scmp.ge.s32.totalorder %s42, 2
      %s44 = scalar_select %p43, 0, %s42
      %s45 = ssub.s32 %s25, %s44
      %s46 = ssub.s32 %s26, %s40
      %s47 = sor.u32 %s45, %s46
      %p48 = scmp.eq.s32.totalorder %s47, 0
      %s50 = sadd.s32 %s49, 1
      %s51 = scalar_select %p48, %s49, %s50
      %p54 = pneg %p48
      %p55 = scmp.eq.s32.totalorder %s18, 1
      %p56 = por %p54, %p55
      %p57 = scmp.ne.s32.totalorder %s49, %s52
      %p58 = scmp.eq.s32.totalorder %s18, 0
      %p59 = por %p57, %p58
      %p60 = scmp.ne.s32.totalorder %s49, %s52
      %p61 = scmp.eq.s32.totalorder %s23, 1
      %p62 = por %p60, %p61
      %p63 = scmp.ne.s32.totalorder %s52, %s53
      %p64 = scmp.eq.s32.totalorder %s23, 0
      %p65 = por %p63, %p64
      %p66 = scmp.ne.s32.totalorder %s52, %s53
      %p67 = scmp.eq.s32.totalorder %s24, 1
      %p68 = por %p66, %p67
      %p70 = scmp.ne.s32.totalorder %s53, %s69
      %p71 = scmp.eq.s32.totalorder %s24, 0
      %p72 = por %p70, %p71
      %s73 = ssub.s32 %s25, %s44
      %s74 = ssub.s32 %s27, %s36
      %s75 = sor.u32 %s73, %s74
      %p76 = scmp.eq.s32.totalorder %s75, 0
      %s78 = sadd.s32 %s77, 1
      %s79 = scalar_select %p76, %s77, %s78
      %p82 = pneg %p76
      %p83 = scmp.eq.s32.totalorder %s18, 1
      %p84 = por %p82, %p83
      %p85 = scmp.ne.s32.totalorder %s77, %s80
      %p86 = scmp.eq.s32.totalorder %s18, 0
      %p87 = por %p85, %p86
      %p88 = scmp.ne.s32.totalorder %s77, %s80
      %p89 = scmp.eq.s32.totalorder %s23, 1
      %p90 = por %p88, %p89
      %p91 = scmp.ne.s32.totalorder %s80, %s81
      %p92 = scmp.eq.s32.totalorder %s23, 0
      %p93 = por %p91, %p92
      %p94 = scmp.ne.s32.totalorder %s80, %s81
      %p95 = scmp.eq.s32.totalorder %s24, 1
      %p96 = por %p94, %p95
      %p98 = scmp.ne.s32.totalorder %s81, %s97
      %p99 = scmp.eq.s32.totalorder %s24, 0
      %p100 = por %p98, %p99
      %s101 = ssub.s32 %s25, %s44
      %s102 = ssub.s32 %s27, %s36
      %s103 = sor.u32 %s101, %s102
      %p104 = scmp.eq.s32.totalorder %s103, 0
      %s106 = sadd.s32 %s105, 1
      %s107 = scalar_select %p104, %s105, %s106
      %p110 = pneg %p104
      %p111 = scmp.eq.s32.totalorder %s18, 1
      %p112 = por %p110, %p111
      %p113 = scmp.ne.s32.totalorder %s105, %s108
      %p114 = scmp.eq.s32.totalorder %s18, 0
      %p115 = por %p113, %p114
      %p116 = scmp.ne.s32.totalorder %s105, %s108
      %p117 = scmp.eq.s32.totalorder %s23, 1
      %p118 = por %p116, %p117
      %p119 = scmp.ne.s32.totalorder %s108, %s109
      %p120 = scmp.eq.s32.totalorder %s23, 0
      %p121 = por %p119, %p120
      %p122 = scmp.ne.s32.totalorder %s108, %s109
      %p123 = scmp.eq.s32.totalorder %s24, 1
      %p124 = por %p122, %p123
      %p126 = scmp.ne.s32.totalorder %s109, %s125
      %p127 = scmp.eq.s32.totalorder %s24, 0
      %p128 = por %p126, %p127
      %s129 = ssub.s32 %s25, %s44
      %s130 = ssub.s32 %s26, %s40
      %s131 = sor.u32 %s129, %s130
      %p132 = scmp.eq.s32.totalorder %s131, 0
      %s134 = sadd.s32 %s133, 1
      %s135 = scalar_select %p132, %s133, %s134
      %p138 = pneg %p132
      %p139 = scmp.eq.s32.totalorder %s18, 1
      %p140 = por %p138, %p139
      %p141 = scmp.ne.s32.totalorder %s133, %s136
      %p142 = scmp.eq.s32.totalorder %s18, 0
      %p143 = por %p141, %p142
      %p144 = scmp.ne.s32.totalorder %s133, %s136
      %p145 = scmp.eq.s32.totalorder %s23, 1
      %p146 = por %p144, %p145
      %p147 = scmp.ne.s32.totalorder %s136, %s137
      %p148 = scmp.eq.s32.totalorder %s23, 0
      %p149 = por %p147, %p148
      %p150 = scmp.ne.s32.totalorder %s136, %s137
      %p151 = scmp.eq.s32.totalorder %s24, 1
      %p152 = por %p150, %p151
      %p154 = scmp.ne.s32.totalorder %s137, %s153
      %p155 = scmp.eq.s32.totalorder %s24, 0
      %p156 = por %p154, %p155
      %p157 = scmp.le.s32.totalorder 1, %s18
      %p158 = scmp.lt.s32.totalorder %s18, 3
      %p159 = pnand %p157, %p158
      %p160 = pneg %p159
      // Predicated region
      $region9: #{tpu_custom_call.1} parent=5 // pred_check
        _
      $region10: #{tpu_custom_call.1} parent=5 // pred_check_branch
        %162 = sbr.rel (%p159) target = $region12
      $region11: #{tpu_custom_call.1} parent=5 // pred_region
        %s163 = ssub.s32 %s18, 1
      $region12: #{tpu_custom_call.1} parent=5 // pred_fallthru
        _
      %p164 = scmp.lt.s32.totalorder %s18, 2
      // Predicated region
      $region13: #{tpu_custom_call.1} parent=5 // pred_check
        %p165 = pneg %p164
      $region14: #{tpu_custom_call.1} parent=5 // pred_check_branch
        %167 = sbr.rel (%p165) target = $region16
      $region15: #{tpu_custom_call.1} parent=5 // pred_region
        // Predicated region
        $region17: #{tpu_custom_call.1} parent=15 // pred_check
          %p168 = pneg %p59
        $region18: #{tpu_custom_call.1} parent=15 // pred_check_branch
          %170 = sbr.rel (%p168) target = $region20
        $region19: #{tpu_custom_call.1} parent=15 // pred_region
          %s171 = sand.u32 %s49, 1
          %s172 = scalar_lea.sflag [#allocation6], %s171
          %s173 = sand.u32 %s49, 1
          %s174 = smul.addr %s173, 32
          %s175 = scalar_lea.vmem [#allocation5], %s174
          %s177 = ssub.s32 512, 512
          %178 = vsyncadd %s172, %s177
          %s179 = smul.addr %s25, 4
          %s180 = sadd.s32 %s26, %s179
          %s181 = smul.addr %s180, 128
          %s182 = scalar_lea.hbm %s0, %s181
          %s183 = sshll.u32 %s175, 4
          %s184 = int_to_ptr.vmem [resolvable:$true] %s183
          %189 = dma.hbm_to_vmem [thread:$0]  %s182, 512, %s184, %s172, 128, 128, 8
        $region20: #{tpu_custom_call.1} parent=15 // pred_fallthru
          _
        // Predicated region
        $region21: #{tpu_custom_call.1} parent=15 // pred_check
          %p190 = pneg %p87
        $region22: #{tpu_custom_call.1} parent=15 // pred_check_branch
          %192 = sbr.rel (%p190) target = $region24
        $region23: #{tpu_custom_call.1} parent=15 // pred_region
          %s193 = sand.u32 %s18, 1
          %s194 = scalar_lea.sflag [#allocation9], %s193
          %s195 = sand.u32 %s77, 1
          %s196 = smul.addr %s195, 32
          %s197 = scalar_lea.vmem [#allocation8], %s196
          %s199 = ssub.s32 512, 512
          %200 = vsyncadd %s194, %s199
          %s201 = smul.addr %s25, 4
          %s202 = sadd.s32 %s27, %s201
          %s203 = smul.addr %s202, 128
          %s204 = scalar_lea.hbm %s1, %s203
          %s205 = sshll.u32 %s197, 4
          %s206 = int_to_ptr.vmem [resolvable:$true] %s205
          %211 = dma.hbm_to_vmem [thread:$0]  %s204, 512, %s206, %s194, 128, 128, 8
        $region24: #{tpu_custom_call.1} parent=15 // pred_fallthru
          _
        // Predicated region
        $region25: #{tpu_custom_call.1} parent=15 // pred_check
          %p212 = pneg %p115
        $region26: #{tpu_custom_call.1} parent=15 // pred_check_branch
          %214 = sbr.rel (%p212) target = $region28
        $region27: #{tpu_custom_call.1} parent=15 // pred_region
          %s215 = sand.u32 %s18, 1
          %s216 = scalar_lea.sflag [#allocation9], %s215
          %s217 = sand.u32 %s105, 1
          %s218 = smul.addr %s217, 32
          %s219 = scalar_lea.vmem [#allocation10], %s218
          %s221 = ssub.s32 512, 512
          %222 = vsyncadd %s216, %s221
          %s223 = smul.addr %s25, 4
          %s224 = sadd.s32 %s27, %s223
          %s225 = smul.addr %s224, 128
          %s226 = scalar_lea.hbm %s2, %s225
          %s227 = sshll.u32 %s219, 4
          %s228 = int_to_ptr.vmem [resolvable:$true] %s227
          %233 = dma.hbm_to_vmem [thread:$0]  %s226, 512, %s228, %s216, 128, 128, 8
        $region28: #{tpu_custom_call.1} parent=15 // pred_fallthru
          _
      $region16: #{tpu_custom_call.1} parent=5 // pred_fallthru
        _
      %p234 = scmp.le.s32.totalorder 1, %s18
      %p235 = scmp.lt.s32.totalorder %s18, 3
      %p236 = pnand %p234, %p235
      %p237 = pneg %p236
      // Predicated region
      $region29: #{tpu_custom_call.1} parent=5 // pred_check
        _
      $region30: #{tpu_custom_call.1} parent=5 // pred_check_branch
        %239 = sbr.rel (%p236) target = $region32
      $region31: #{tpu_custom_call.1} parent=5 // pred_region
        %s240 = ssub.s32 %s18, 1
        %s241 = sand.u32 %s52, 1
        %s242 = scalar_lea.sflag [#allocation6], %s241
        %s243 = sand.u32 %s52, 1
        %s244 = smul.addr %s243, 32
        %s245 = scalar_lea.vmem [#allocation5], %s244
        // Predicated region
        $region33: #{tpu_custom_call.1} parent=31 // pred_check
          %p246 = pneg %p65
        $region34: #{tpu_custom_call.1} parent=31 // pred_check_branch
          %248 = sbr.rel (%p246) target = $region36
        $region35: #{tpu_custom_call.1} parent=31 // pred_region
          %249 = dma.done %s242, 512
        $region36: #{tpu_custom_call.1} parent=31 // pred_fallthru
          _
        %s250 = sand.u32 %s23, 1
        %s251 = scalar_lea.sflag [#allocation9], %s250
        %s252 = sand.u32 %s80, 1
        %s253 = smul.addr %s252, 32
        %s254 = scalar_lea.vmem [#allocation8], %s253
        // Predicated region
        $region37: #{tpu_custom_call.1} parent=31 // pred_check
          %p255 = pneg %p93
        $region38: #{tpu_custom_call.1} parent=31 // pred_check_branch
          %257 = sbr.rel (%p255) target = $region40
        $region39: #{tpu_custom_call.1} parent=31 // pred_region
          %258 = dma.done %s251, 512
        $region40: #{tpu_custom_call.1} parent=31 // pred_fallthru
          _
        %s259 = sand.u32 %s23, 1
        %s260 = scalar_lea.sflag [#allocation9], %s259
        %s261 = sand.u32 %s108, 1
        %s262 = smul.addr %s261, 32
        %s263 = scalar_lea.vmem [#allocation10], %s262
        // Predicated region
        $region41: #{tpu_custom_call.1} parent=31 // pred_check
          %p264 = pneg %p121
        $region42: #{tpu_custom_call.1} parent=31 // pred_check_branch
          %266 = sbr.rel (%p264) target = $region44
        $region43: #{tpu_custom_call.1} parent=31 // pred_region
          %267 = dma.done %s260, 512
        $region44: #{tpu_custom_call.1} parent=31 // pred_fallthru
          _
        %s268 = sand.u32 %s52, 1
        %s269 = scalar_lea.sflag [#allocation6], %s268
        %s270 = sand.u32 %s52, 1
        %s271 = smul.addr %s270, 32
        %s272 = scalar_lea.vmem [#allocation5], %s271
        %p273 = pneg %p65
        %p274 = pneg %p62
        %s275 = sand.u32 %s23, 1
        %s276 = scalar_lea.sflag [#allocation9], %s275
        %s277 = sand.u32 %s80, 1
        %s278 = smul.addr %s277, 32
        %s279 = scalar_lea.vmem [#allocation8], %s278
        %p280 = pneg %p93
        %p281 = pneg %p90
        %s282 = sand.u32 %s23, 1
        %s283 = scalar_lea.sflag [#allocation9], %s282
        %s284 = sand.u32 %s108, 1
        %s285 = smul.addr %s284, 32
        %s286 = scalar_lea.vmem [#allocation10], %s285
        %p287 = pneg %p121
        %p288 = pneg %p118
        %p289 = pneg %p149
        %p290 = pneg %p146
        %s291 = sand.u32 %s136, 1
        %s292 = scalar_lea.sflag [#allocation7], %s291
        %s293 = sand.u32 %s136, 1
        %s294 = smul.addr %s293, 32
        %s295 = scalar_lea.vmem [#allocation11], %s294
        %s296 = smul.u32 8, %s29
        %p297 = scmp.eq.s32.totalorder %s30, 0
        // Predicated region
        $region45: #{tpu_custom_call.1} parent=31 // pred_check
          %p298 = pneg %p297
        $region46: #{tpu_custom_call.1} parent=31 // pred_check_branch
          %300 = sbr.rel (%p298) target = $region48
        $region47: #{tpu_custom_call.1} parent=31 // pred_region
          %vm301 = vcmask 7168
          %302 = vst.msk [vmem:[#allocation2] sm:$0xff] %vm301, -inf
          %303 = vst.msk [vmem:[#allocation2 + $0x8] sm:$0xff] %vm301, -inf
          %304 = vst.msk [vmem:[#allocation2 + $0x10] sm:$0xff] %vm301, -inf
          %305 = vst.msk [vmem:[#allocation2 + $0x18] sm:$0xff] %vm301, -inf
          %306 = vst.msk [vmem:[#allocation3] sm:$0xff] %vm301, 0.0
          %307 = vst.msk [vmem:[#allocation3 + $0x8] sm:$0xff] %vm301, 0.0
          %308 = vst.msk [vmem:[#allocation3 + $0x10] sm:$0xff] %vm301, 0.0
          %309 = vst.msk [vmem:[#allocation3 + $0x18] sm:$0xff] %vm301, 0.0
          %vm310 = vcmask 261120
          %311 = vst.msk [vmem:[#allocation4] sm:$0xff] %vm310, 0.0
          %312 = vst.msk [vmem:[#allocation4 + $0x8] sm:$0xff] %vm310, 0.0
          %313 = vst.msk [vmem:[#allocation4 + $0x10] sm:$0xff] %vm310, 0.0
          %314 = vst.msk [vmem:[#allocation4 + $0x18] sm:$0xff] %vm310, 0.0
        $region48: #{tpu_custom_call.1} parent=31 // pred_fallthru
          _
        %v315 = vld [vmem:[%s245] sm:$0xff]
        %v316 = vmul.f32 %v315, 0.17677669
        %v317 = vld [vmem:[%s254] sm:$0xff]
        %v318 = vld [vmem:[%s263] sm:$0xff]
        %vm319 = vcmask 261120
        %v321 = vsel %vm319, %v316, 0
        %v324 = vsel %vm319, %v317, 0
        %326 = vmatprep.subr.mxu0 0.0
        %327 = vmatpush1.xpose.msra.mxu0 %v324
        %328 = vmatprep.subr.mxu0 0.0
        %329 = vmatpush1.xpose.msra.mxu0 0.0
        %330 = vmatprep.subr.mxu0 0.0
        %331 = vmatpush1.xpose.msra.mxu0 0.0
        %332 = vmatprep.subr.mxu0 0.0
        %333 = vmatpush1.xpose.msra.mxu0 0.0
        %334 = vmatprep.subr.mxu0 0.0
        %335 = vmatpush1.xpose.msra.mxu0 0.0
        %336 = vmatprep.subr.mxu0 0.0
        %337 = vmatpush1.xpose.msra.mxu0 0.0
        %338 = vmatprep.subr.mxu0 0.0
        %339 = vmatpush1.xpose.msra.mxu0 0.0
        %340 = vmatprep.subr.mxu0 0.0
        %341 = vmatpush1.xpose.msra.mxu0 0.0
        %342 = vmatprep.subr.mxu0 0.0
        %343 = vmatpush1.xpose.msra.mxu0 0.0
        %344 = vmatprep.subr.mxu0 0.0
        %345 = vmatpush1.xpose.msra.mxu0 0.0
        %346 = vmatprep.subr.mxu0 0.0
        %347 = vmatpush1.xpose.msra.mxu0 0.0
        %348 = vmatprep.subr.mxu0 0.0
        %349 = vmatpush1.xpose.msra.mxu0 0.0
        %350 = vmatprep.subr.mxu0 0.0
        %351 = vmatpush1.xpose.msra.mxu0 0.0
        %352 = vmatprep.subr.mxu0 0.0
        %353 = vmatpush1.xpose.msra.mxu0 0.0
        %354 = vmatprep.subr.mxu0 0.0
        %355 = vmatpush1.xpose.msra.mxu0 0.0
        %356 = vmatprep.subr.mxu0 0.0
        %357 = vmatpush1.xpose.msra.mxu0 0.0
        %358 = vmatprep.subr.mxu0 0.0
        %359 = vmatpush1.xpose.msra.mxu0 0.0
        %360 = vmatprep.subr.mxu0 0.0
        %361 = vmatpush1.xpose.msra.mxu0 0.0
        %362 = vmatprep.subr.mxu0 0.0
        %363 = vmatpush1.xpose.msra.mxu0 0.0
        %364 = vmatprep.subr.mxu0 0.0
        %365 = vmatpush1.xpose.msra.mxu0 0.0
        %366 = vmatprep.subr.mxu0 0.0
        %367 = vmatpush1.xpose.msra.mxu0 0.0
        %368 = vmatprep.subr.mxu0 0.0
        %369 = vmatpush1.xpose.msra.mxu0 0.0
        %370 = vmatprep.subr.mxu0 0.0
        %371 = vmatpush1.xpose.msra.mxu0 0.0
        %372 = vmatprep.subr.mxu0 0.0
        %373 = vmatpush1.xpose.msra.mxu0 0.0
        %374 = vmatprep.subr.mxu0 0.0
        %375 = vmatpush1.xpose.msra.mxu0 0.0
        %376 = vmatprep.subr.mxu0 0.0
        %377 = vmatpush1.xpose.msra.mxu0 0.0
        %378 = vmatprep.subr.mxu0 0.0
        %379 = vmatpush1.xpose.msra.mxu0 0.0
        %380 = vmatprep.subr.mxu0 0.0
        %381 = vmatpush1.xpose.msra.mxu0 0.0
        %382 = vmatprep.subr.mxu0 0.0
        %383 = vmatpush1.xpose.msra.mxu0 0.0
        %384 = vmatprep.subr.mxu0 0.0
        %385 = vmatpush1.xpose.msra.mxu0 0.0
        %386 = vmatprep.subr.mxu0 0.0
        %387 = vmatpush1.xpose.msra.mxu0 0.0
        %388 = vmatprep.subr.mxu0 0.0
        %389 = vmatpush1.xpose.msra.mxu0 0.0
        %390 = vmatprep.mubr.f32.mxu0 0.0
        %391 = vmatmul.mubr.f32.gmra.mrb[0].mxu0 %v321
        %v392 = vpop.f32.mrb[0].mxu0
        %v393 = vadd.f32 0.0, %v392
        %v394 = vpop.f32.mrb[0].mxu0
        %395 = vdwg.mxu0
        %v396 = vld [vmem:[#allocation2] sm:$0xff]
        %vm397 = vcmask 64512
        %v398 = vsel %vm397, %v393, -inf
        %399 = vmax.xlane.f32.xlu0 %v398
        %v400 = vpop.xlane.xlu0 %399
        %v401 = vmax.f32 %v396, %v400
        %v402 = vsub.f32 %v396, %v401
        %v403 = vmul.f32 %v402, 1.442695
        %v404 = vpow.pop %v403
        %406 = vset.pattern.permute.xlu0 0
        %407 = vperm.xlu0 %406, %v401
        %v408 = vpop.permute.xlu0 %407
        %v410 = vsub.f32 %v393, %v408
        %v411 = vmul.f32 %v410, 1.442695
        %v412 = vpow.pop %v411
        %v414 = vsel %vm397, %v412, 0
        %416 = vmatprep.subr.mxu0 0.0
        %417 = vmatpush1.msra.mxu0 %v318
        %418 = vmatprep.subr.mxu0 0.0
        %419 = vmatpush1.msra.mxu0 0.0
        %420 = vmatprep.subr.mxu0 0.0
        %421 = vmatpush1.msra.mxu0 0.0
        %422 = vmatprep.subr.mxu0 0.0
        %423 = vmatpush1.msra.mxu0 0.0
        %424 = vmatprep.subr.mxu0 0.0
        %425 = vmatpush1.msra.mxu0 0.0
        %426 = vmatprep.subr.mxu0 0.0
        %427 = vmatpush1.msra.mxu0 0.0
        %428 = vmatprep.subr.mxu0 0.0
        %429 = vmatpush1.msra.mxu0 0.0
        %430 = vmatprep.subr.mxu0 0.0
        %431 = vmatpush1.msra.mxu0 0.0
        %432 = vmatprep.subr.mxu0 0.0
        %433 = vmatpush1.msra.mxu0 0.0
        %434 = vmatprep.subr.mxu0 0.0
        %435 = vmatpush1.msra.mxu0 0.0
        %436 = vmatprep.subr.mxu0 0.0
        %437 = vmatpush1.msra.mxu0 0.0
        %438 = vmatprep.subr.mxu0 0.0
        %439 = vmatpush1.msra.mxu0 0.0
        %440 = vmatprep.subr.mxu0 0.0
        %441 = vmatpush1.msra.mxu0 0.0
        %442 = vmatprep.subr.mxu0 0.0
        %443 = vmatpush1.msra.mxu0 0.0
        %444 = vmatprep.subr.mxu0 0.0
        %445 = vmatpush1.msra.mxu0 0.0
        %446 = vmatprep.subr.mxu0 0.0
        %447 = vmatpush1.msra.mxu0 0.0
        %448 = vmatprep.subr.mxu0 0.0
        %449 = vmatpush1.msra.mxu0 0.0
        %450 = vmatprep.subr.mxu0 0.0
        %451 = vmatpush1.msra.mxu0 0.0
        %452 = vmatprep.subr.mxu0 0.0
        %453 = vmatpush1.msra.mxu0 0.0
        %454 = vmatprep.subr.mxu0 0.0
        %455 = vmatpush1.msra.mxu0 0.0
        %456 = vmatprep.subr.mxu0 0.0
        %457 = vmatpush1.msra.mxu0 0.0
        %458 = vmatprep.subr.mxu0 0.0
        %459 = vmatpush1.msra.mxu0 0.0
        %460 = vmatprep.subr.mxu0 0.0
        %461 = vmatpush1.msra.mxu0 0.0
        %462 = vmatprep.subr.mxu0 0.0
        %463 = vmatpush1.msra.mxu0 0.0
        %464 = vmatprep.subr.mxu0 0.0
        %465 = vmatpush1.msra.mxu0 0.0
        %466 = vmatprep.subr.mxu0 0.0
        %467 = vmatpush1.msra.mxu0 0.0
        %468 = vmatprep.subr.mxu0 0.0
        %469 = vmatpush1.msra.mxu0 0.0
        %470 = vmatprep.subr.mxu0 0.0
        %471 = vmatpush1.msra.mxu0 0.0
        %472 = vmatprep.subr.mxu0 0.0
        %473 = vmatpush1.msra.mxu0 0.0
        %474 = vmatprep.subr.mxu0 0.0
        %475 = vmatpush1.msra.mxu0 0.0
        %476 = vmatprep.subr.mxu0 0.0
        %477 = vmatpush1.msra.mxu0 0.0
        %478 = vmatprep.subr.mxu0 0.0
        %479 = vmatpush1.msra.mxu0 0.0
        %480 = vmatprep.mubr.f32.mxu0 0.0
        %481 = vmatmul.mubr.f32.gmra.mrb[0].mxu0 %v414
        %v482 = vpop.f32.mrb[0].mxu0
        %v483 = vadd.f32 0.0, %v482
        %v484 = vpop.f32.mrb[0].mxu0
        %485 = vdwg.mxu0
        %v486 = vld [vmem:[#allocation3] sm:$0xff]
        %v487 = vmul.f32 %v404, %v486
        %489 = vrot.lane.b32.xlu0 %v483, 96
        %v490 = vpop.permute.xlu0 %489
        %v492 = vadd.f32 %v487, %v490
        %vm493 = vcmask 7168
        %494 = vst.msk [vmem:[#allocation3] sm:$0xff] %vm493, %v492
        %v495 = vld [vmem:[#allocation4] sm:$0xff]
        %497 = vset.pattern.permute.xlu0 0
        %498 = vperm.xlu0 %497, %v404
        %v499 = vpop.permute.xlu0 %498
        %v501 = vmul.f32 %v499, %v495
        %v502 = vadd.f32 %v501, %v483
        %503 = vst.msk [vmem:[#allocation4] sm:$0xff] %vm319, %v502
        %504 = vst.msk [vmem:[#allocation2] sm:$0xff] %vm493, %v401
        %s505 = scalar_lea.vmem %s245, 8 [#allocation5]
        %v506 = vld [vmem:[%s505] sm:$0xff]
        %v507 = vmul.f32 %v506, 0.17677669
        %s508 = scalar_lea.vmem %s254, 8 [#allocation8]
        %v509 = vld [vmem:[%s508] sm:$0xff]
        %s510 = scalar_lea.vmem %s263, 8 [#allocation10]
        %v511 = vld [vmem:[%s510] sm:$0xff]
        %v513 = vsel %vm319, %v507, 0
        %v516 = vsel %vm319, %v509, 0
        %518 = vmatprep.subr.mxu0 0.0
        %519 = vmatpush1.xpose.msra.mxu0 %v516
        %520 = vmatprep.subr.mxu0 0.0
        %521 = vmatpush1.xpose.msra.mxu0 0.0
        %522 = vmatprep.subr.mxu0 0.0
        %523 = vmatpush1.xpose.msra.mxu0 0.0
        %524 = vmatprep.subr.mxu0 0.0
        %525 = vmatpush1.xpose.msra.mxu0 0.0
        %526 = vmatprep.subr.mxu0 0.0
        %527 = vmatpush1.xpose.msra.mxu0 0.0
        %528 = vmatprep.subr.mxu0 0.0
        %529 = vmatpush1.xpose.msra.mxu0 0.0
        %530 = vmatprep.subr.mxu0 0.0
        %531 = vmatpush1.xpose.msra.mxu0 0.0
        %532 = vmatprep.subr.mxu0 0.0
        %533 = vmatpush1.xpose.msra.mxu0 0.0
        %534 = vmatprep.subr.mxu0 0.0
        %535 = vmatpush1.xpose.msra.mxu0 0.0
        %536 = vmatprep.subr.mxu0 0.0
        %537 = vmatpush1.xpose.msra.mxu0 0.0
        %538 = vmatprep.subr.mxu0 0.0
        %539 = vmatpush1.xpose.msra.mxu0 0.0
        %540 = vmatprep.subr.mxu0 0.0
        %541 = vmatpush1.xpose.msra.mxu0 0.0
        %542 = vmatprep.subr.mxu0 0.0
        %543 = vmatpush1.xpose.msra.mxu0 0.0
        %544 = vmatprep.subr.mxu0 0.0
        %545 = vmatpush1.xpose.msra.mxu0 0.0
        %546 = vmatprep.subr.mxu0 0.0
        %547 = vmatpush1.xpose.msra.mxu0 0.0
        %548 = vmatprep.subr.mxu0 0.0
        %549 = vmatpush1.xpose.msra.mxu0 0.0
        %550 = vmatprep.subr.mxu0 0.0
        %551 = vmatpush1.xpose.msra.mxu0 0.0
        %552 = vmatprep.subr.mxu0 0.0
        %553 = vmatpush1.xpose.msra.mxu0 0.0
        %554 = vmatprep.subr.mxu0 0.0
        %555 = vmatpush1.xpose.msra.mxu0 0.0
        %556 = vmatprep.subr.mxu0 0.0
        %557 = vmatpush1.xpose.msra.mxu0 0.0
        %558 = vmatprep.subr.mxu0 0.0
        %559 = vmatpush1.xpose.msra.mxu0 0.0
        %560 = vmatprep.subr.mxu0 0.0
        %561 = vmatpush1.xpose.msra.mxu0 0.0
        %562 = vmatprep.subr.mxu0 0.0
        %563 = vmatpush1.xpose.msra.mxu0 0.0
        %564 = vmatprep.subr.mxu0 0.0
        %565 = vmatpush1.xpose.msra.mxu0 0.0
        %566 = vmatprep.subr.mxu0 0.0
        %567 = vmatpush1.xpose.msra.mxu0 0.0
        %568 = vmatprep.subr.mxu0 0.0
        %569 = vmatpush1.xpose.msra.mxu0 0.0
        %570 = vmatprep.subr.mxu0 0.0
        %571 = vmatpush1.xpose.msra.mxu0 0.0
        %572 = vmatprep.subr.mxu0 0.0
        %573 = vmatpush1.xpose.msra.mxu0 0.0
        %574 = vmatprep.subr.mxu0 0.0
        %575 = vmatpush1.xpose.msra.mxu0 0.0
        %576 = vmatprep.subr.mxu0 0.0
        %577 = vmatpush1.xpose.msra.mxu0 0.0
        %578 = vmatprep.subr.mxu0 0.0
        %579 = vmatpush1.xpose.msra.mxu0 0.0
        %580 = vmatprep.subr.mxu0 0.0
        %581 = vmatpush1.xpose.msra.mxu0 0.0
        %582 = vmatprep.mubr.f32.mxu0 0.0
        %583 = vmatmul.mubr.f32.gmra.mrb[0].mxu0 %v513
        %v584 = vpop.f32.mrb[0].mxu0
        %v585 = vadd.f32 0.0, %v584
        %v586 = vpop.f32.mrb[0].mxu0
        %587 = vdwg.mxu0
        %s588 = scalar_lea.vmem [#allocation2], 8
        %v589 = vld [vmem:[%s588] sm:$0xff]
        %v590 = vsel %vm397, %v585, -inf
        %591 = vmax.xlane.f32.xlu0 %v590
        %v592 = vpop.xlane.xlu0 %591
        %v593 = vmax.f32 %v589, %v592
        %v594 = vsub.f32 %v589, %v593
        %v595 = vmul.f32 %v594, 1.442695
        %v596 = vpow.pop %v595
        %598 = vset.pattern.permute.xlu0 0
        %599 = vperm.xlu0 %598, %v593
        %v600 = vpop.permute.xlu0 %599
        %v602 = vsub.f32 %v585, %v600
        %v603 = vmul.f32 %v602, 1.442695
        %v604 = vpow.pop %v603
        %v606 = vsel %vm397, %v604, 0
        %608 = vmatprep.subr.mxu0 0.0
        %609 = vmatpush1.msra.mxu0 %v511
        %610 = vmatprep.subr.mxu0 0.0
        %611 = vmatpush1.msra.mxu0 0.0
        %612 = vmatprep.subr.mxu0 0.0
        %613 = vmatpush1.msra.mxu0 0.0
        %614 = vmatprep.subr.mxu0 0.0
        %615 = vmatpush1.msra.mxu0 0.0
        %616 = vmatprep.subr.mxu0 0.0
        %617 = vmatpush1.msra.mxu0 0.0
        %618 = vmatprep.subr.mxu0 0.0
        %619 = vmatpush1.msra.mxu0 0.0
        %620 = vmatprep.subr.mxu0 0.0
        %621 = vmatpush1.msra.mxu0 0.0
        %622 = vmatprep.subr.mxu0 0.0
        %623 = vmatpush1.msra.mxu0 0.0
        %624 = vmatprep.subr.mxu0 0.0
        %625 = vmatpush1.msra.mxu0 0.0
        %626 = vmatprep.subr.mxu0 0.0
        %627 = vmatpush1.msra.mxu0 0.0
        %628 = vmatprep.subr.mxu0 0.0
        %629 = vmatpush1.msra.mxu0 0.0
        %630 = vmatprep.subr.mxu0 0.0
        %631 = vmatpush1.msra.mxu0 0.0
        %632 = vmatprep.subr.mxu0 0.0
        %633 = vmatpush1.msra.mxu0 0.0
        %634 = vmatprep.subr.mxu0 0.0
        %635 = vmatpush1.msra.mxu0 0.0
        %636 = vmatprep.subr.mxu0 0.0
        %637 = vmatpush1.msra.mxu0 0.0
        %638 = vmatprep.subr.mxu0 0.0
        %639 = vmatpush1.msra.mxu0 0.0
        %640 = vmatprep.subr.mxu0 0.0
        %641 = vmatpush1.msra.mxu0 0.0
        %642 = vmatprep.subr.mxu0 0.0
        %643 = vmatpush1.msra.mxu0 0.0
        %644 = vmatprep.subr.mxu0 0.0
        %645 = vmatpush1.msra.mxu0 0.0
        %646 = vmatprep.subr.mxu0 0.0
        %647 = vmatpush1.msra.mxu0 0.0
        %648 = vmatprep.subr.mxu0 0.0
        %649 = vmatpush1.msra.mxu0 0.0
        %650 = vmatprep.subr.mxu0 0.0
        %651 = vmatpush1.msra.mxu0 0.0
        %652 = vmatprep.subr.mxu0 0.0
        %653 = vmatpush1.msra.mxu0 0.0
        %654 = vmatprep.subr.mxu0 0.0
        %655 = vmatpush1.msra.mxu0 0.0
        %656 = vmatprep.subr.mxu0 0.0
        %657 = vmatpush1.msra.mxu0 0.0
        %658 = vmatprep.subr.mxu0 0.0
        %659 = vmatpush1.msra.mxu0 0.0
        %660 = vmatprep.subr.mxu0 0.0
        %661 = vmatpush1.msra.mxu0 0.0
        %662 = vmatprep.subr.mxu0 0.0
        %663 = vmatpush1.msra.mxu0 0.0
        %664 = vmatprep.subr.mxu0 0.0
        %665 = vmatpush1.msra.mxu0 0.0
        %666 = vmatprep.subr.mxu0 0.0
        %667 = vmatpush1.msra.mxu0 0.0
        %668 = vmatprep.subr.mxu0 0.0
        %669 = vmatpush1.msra.mxu0 0.0
        %670 = vmatprep.subr.mxu0 0.0
        %671 = vmatpush1.msra.mxu0 0.0
        %672 = vmatprep.mubr.f32.mxu0 0.0
        %673 = vmatmul.mubr.f32.gmra.mrb[0].mxu0 %v606
        %v674 = vpop.f32.mrb[0].mxu0
        %v675 = vadd.f32 0.0, %v674
        %v676 = vpop.f32.mrb[0].mxu0
        %677 = vdwg.mxu0
        %s678 = scalar_lea.vmem [#allocation3], 8
        %v679 = vld [vmem:[%s678] sm:$0xff]
        %v680 = vmul.f32 %v596, %v679
        %682 = vrot.lane.b32.xlu0 %v675, 96
        %v683 = vpop.permute.xlu0 %682
        %v685 = vadd.f32 %v680, %v683
        %686 = vst.msk [vmem:[%s678] sm:$0xff] %vm493, %v685
        %s687 = scalar_lea.vmem [#allocation4], 8
        %v688 = vld [vmem:[%s687] sm:$0xff]
        %690 = vset.pattern.permute.xlu0 0
        %691 = vperm.xlu0 %690, %v596
        %v692 = vpop.permute.xlu0 %691
        %v694 = vmul.f32 %v692, %v688
        %v695 = vadd.f32 %v694, %v675
        %696 = vst.msk [vmem:[%s687] sm:$0xff] %vm319, %v695
        %697 = vst.msk [vmem:[%s588] sm:$0xff] %vm493, %v593
        %s698 = scalar_lea.vmem %s245, 16 [#allocation5]
        %v699 = vld [vmem:[%s698] sm:$0xff]
        %v700 = vmul.f32 %v699, 0.17677669
        %s701 = scalar_lea.vmem %s254, 16 [#allocation8]
        %v702 = vld [vmem:[%s701] sm:$0xff]
        %s703 = scalar_lea.vmem %s263, 16 [#allocation10]
        %v704 = vld [vmem:[%s703] sm:$0xff]
        %v706 = vsel %vm319, %v700, 0
        %v709 = vsel %vm319, %v702, 0
        %711 = vmatprep.subr.mxu0 0.0
        %712 = vmatpush1.xpose.msra.mxu0 %v709
        %713 = vmatprep.subr.mxu0 0.0
        %714 = vmatpush1.xpose.msra.mxu0 0.0
        %715 = vmatprep.subr.mxu0 0.0
        %716 = vmatpush1.xpose.msra.mxu0 0.0
        %717 = vmatprep.subr.mxu0 0.0
        %718 = vmatpush1.xpose.msra.mxu0 0.0
        %719 = vmatprep.subr.mxu0 0.0
        %720 = vmatpush1.xpose.msra.mxu0 0.0
        %721 = vmatprep.subr.mxu0 0.0
        %722 = vmatpush1.xpose.msra.mxu0 0.0
        %723 = vmatprep.subr.mxu0 0.0
        %724 = vmatpush1.xpose.msra.mxu0 0.0
        %725 = vmatprep.subr.mxu0 0.0
        %726 = vmatpush1.xpose.msra.mxu0 0.0
        %727 = vmatprep.subr.mxu0 0.0
        %728 = vmatpush1.xpose.msra.mxu0 0.0
        %729 = vmatprep.subr.mxu0 0.0
        %730 = vmatpush1.xpose.msra.mxu0 0.0
        %731 = vmatprep.subr.mxu0 0.0
        %732 = vmatpush1.xpose.msra.mxu0 0.0
        %733 = vmatprep.subr.mxu0 0.0
        %734 = vmatpush1.xpose.msra.mxu0 0.0
        %735 = vmatprep.subr.mxu0 0.0
        %736 = vmatpush1.xpose.msra.mxu0 0.0
        %737 = vmatprep.subr.mxu0 0.0
        %738 = vmatpush1.xpose.msra.mxu0 0.0
        %739 = vmatprep.subr.mxu0 0.0
        %740 = vmatpush1.xpose.msra.mxu0 0.0
        %741 = vmatprep.subr.mxu0 0.0
        %742 = vmatpush1.xpose.msra.mxu0 0.0
        %743 = vmatprep.subr.mxu0 0.0
        %744 = vmatpush1.xpose.msra.mxu0 0.0
        %745 = vmatprep.subr.mxu0 0.0
        %746 = vmatpush1.xpose.msra.mxu0 0.0
        %747 = vmatprep.subr.mxu0 0.0
        %748 = vmatpush1.xpose.msra.mxu0 0.0
        %749 = vmatprep.subr.mxu0 0.0
        %750 = vmatpush1.xpose.msra.mxu0 0.0
        %751 = vmatprep.subr.mxu0 0.0
        %752 = vmatpush1.xpose.msra.mxu0 0.0
        %753 = vmatprep.subr.mxu0 0.0
        %754 = vmatpush1.xpose.msra.mxu0 0.0
        %755 = vmatprep.subr.mxu0 0.0
        %756 = vmatpush1.xpose.msra.mxu0 0.0
        %757 = vmatprep.subr.mxu0 0.0
        %758 = vmatpush1.xpose.msra.mxu0 0.0
        %759 = vmatprep.subr.mxu0 0.0
        %760 = vmatpush1.xpose.msra.mxu0 0.0
        %761 = vmatprep.subr.mxu0 0.0
        %762 = vmatpush1.xpose.msra.mxu0 0.0
        %763 = vmatprep.subr.mxu0 0.0
        %764 = vmatpush1.xpose.msra.mxu0 0.0
        %765 = vmatprep.subr.mxu0 0.0
        %766 = vmatpush1.xpose.msra.mxu0 0.0
        %767 = vmatprep.subr.mxu0 0.0
        %768 = vmatpush1.xpose.msra.mxu0 0.0
        %769 = vmatprep.subr.mxu0 0.0
        %770 = vmatpush1.xpose.msra.mxu0 0.0
        %771 = vmatprep.subr.mxu0 0.0
        %772 = vmatpush1.xpose.msra.mxu0 0.0
        %773 = vmatprep.subr.mxu0 0.0
        %774 = vmatpush1.xpose.msra.mxu0 0.0
        %775 = vmatprep.mubr.f32.mxu0 0.0
        %776 = vmatmul.mubr.f32.gmra.mrb[0].mxu0 %v706
        %v777 = vpop.f32.mrb[0].mxu0
        %v778 = vadd.f32 0.0, %v777
        %v779 = vpop.f32.mrb[0].mxu0
        %780 = vdwg.mxu0
        %s781 = scalar_lea.vmem [#allocation2], 16
        %v782 = vld [vmem:[%s781] sm:$0xff]
        %v783 = vsel %vm397, %v778, -inf
        %784 = vmax.xlane.f32.xlu0 %v783
        %v785 = vpop.xlane.xlu0 %784
        %v786 = vmax.f32 %v782, %v785
        %v787 = vsub.f32 %v782, %v786
        %v788 = vmul.f32 %v787, 1.442695
        %v789 = vpow.pop %v788
        %791 = vset.pattern.permute.xlu0 0
        %792 = vperm.xlu0 %791, %v786
        %v793 = vpop.permute.xlu0 %792
        %v795 = vsub.f32 %v778, %v793
        %v796 = vmul.f32 %v795, 1.442695
        %v797 = vpow.pop %v796
        %v799 = vsel %vm397, %v797, 0
        %801 = vmatprep.subr.mxu0 0.0
        %802 = vmatpush1.msra.mxu0 %v704
        %803 = vmatprep.subr.mxu0 0.0
        %804 = vmatpush1.msra.mxu0 0.0
        %805 = vmatprep.subr.mxu0 0.0
        %806 = vmatpush1.msra.mxu0 0.0
        %807 = vmatprep.subr.mxu0 0.0
        %808 = vmatpush1.msra.mxu0 0.0
        %809 = vmatprep.subr.mxu0 0.0
        %810 = vmatpush1.msra.mxu0 0.0
        %811 = vmatprep.subr.mxu0 0.0
        %812 = vmatpush1.msra.mxu0 0.0
        %813 = vmatprep.subr.mxu0 0.0
        %814 = vmatpush1.msra.mxu0 0.0
        %815 = vmatprep.subr.mxu0 0.0
        %816 = vmatpush1.msra.mxu0 0.0
        %817 = vmatprep.subr.mxu0 0.0
        %818 = vmatpush1.msra.mxu0 0.0
        %819 = vmatprep.subr.mxu0 0.0
        %820 = vmatpush1.msra.mxu0 0.0
        %821 = vmatprep.subr.mxu0 0.0
        %822 = vmatpush1.msra.mxu0 0.0
        %823 = vmatprep.subr.mxu0 0.0
        %824 = vmatpush1.msra.mxu0 0.0
        %825 = vmatprep.subr.mxu0 0.0
        %826 = vmatpush1.msra.mxu0 0.0
        %827 = vmatprep.subr.mxu0 0.0
        %828 = vmatpush1.msra.mxu0 0.0
        %829 = vmatprep.subr.mxu0 0.0
        %830 = vmatpush1.msra.mxu0 0.0
        %831 = vmatprep.subr.mxu0 0.0
        %832 = vmatpush1.msra.mxu0 0.0
        %833 = vmatprep.subr.mxu0 0.0
        %834 = vmatpush1.msra.mxu0 0.0
        %835 = vmatprep.subr.mxu0 0.0
        %836 = vmatpush1.msra.mxu0 0.0
        %837 = vmatprep.subr.mxu0 0.0
        %838 = vmatpush1.msra.mxu0 0.0
        %839 = vmatprep.subr.mxu0 0.0
        %840 = vmatpush1.msra.mxu0 0.0
        %841 = vmatprep.subr.mxu0 0.0
        %842 = vmatpush1.msra.mxu0 0.0
        %843 = vmatprep.subr.mxu0 0.0
        %844 = vmatpush1.msra.mxu0 0.0
        %845 = vmatprep.subr.mxu0 0.0
        %846 = vmatpush1.msra.mxu0 0.0
        %847 = vmatprep.subr.mxu0 0.0
        %848 = vmatpush1.msra.mxu0 0.0
        %849 = vmatprep.subr.mxu0 0.0
        %850 = vmatpush1.msra.mxu0 0.0
        %851 = vmatprep.subr.mxu0 0.0
        %852 = vmatpush1.msra.mxu0 0.0
        %853 = vmatprep.subr.mxu0 0.0
        %854 = vmatpush1.msra.mxu0 0.0
        %855 = vmatprep.subr.mxu0 0.0
        %856 = vmatpush1.msra.mxu0 0.0
        %857 = vmatprep.subr.mxu0 0.0
        %858 = vmatpush1.msra.mxu0 0.0
        %859 = vmatprep.subr.mxu0 0.0
        %860 = vmatpush1.msra.mxu0 0.0
        %861 = vmatprep.subr.mxu0 0.0
        %862 = vmatpush1.msra.mxu0 0.0
        %863 = vmatprep.subr.mxu0 0.0
        %864 = vmatpush1.msra.mxu0 0.0
        %865 = vmatprep.mubr.f32.mxu0 0.0
        %866 = vmatmul.mubr.f32.gmra.mrb[0].mxu0 %v799
        %v867 = vpop.f32.mrb[0].mxu0
        %v868 = vadd.f32 0.0, %v867
        %v869 = vpop.f32.mrb[0].mxu0
        %870 = vdwg.mxu0
        %s871 = scalar_lea.vmem [#allocation3], 16
        %v872 = vld [vmem:[%s871] sm:$0xff]
        %v873 = vmul.f32 %v789, %v872
        %875 = vrot.lane.b32.xlu0 %v868, 96
        %v876 = vpop.permute.xlu0 %875
        %v878 = vadd.f32 %v873, %v876
        %879 = vst.msk [vmem:[%s871] sm:$0xff] %vm493, %v878
        %s880 = scalar_lea.vmem [#allocation4], 16
        %v881 = vld [vmem:[%s880] sm:$0xff]
        %883 = vset.pattern.permute.xlu0 0
        %884 = vperm.xlu0 %883, %v789
        %v885 = vpop.permute.xlu0 %884
        %v887 = vmul.f32 %v885, %v881
        %v888 = vadd.f32 %v887, %v868
        %889 = vst.msk [vmem:[%s880] sm:$0xff] %vm319, %v888
        %890 = vst.msk [vmem:[%s781] sm:$0xff] %vm493, %v786
        %s891 = scalar_lea.vmem %s245, 24 [#allocation5]
        %v892 = vld [vmem:[%s891] sm:$0xff]
        %v893 = vmul.f32 %v892, 0.17677669
        %s894 = scalar_lea.vmem %s254, 24 [#allocation8]
        %v895 = vld [vmem:[%s894] sm:$0xff]
        %s896 = scalar_lea.vmem %s263, 24 [#allocation10]
        %v897 = vld [vmem:[%s896] sm:$0xff]
        %v899 = vsel %vm319, %v893, 0
        %v902 = vsel %vm319, %v895, 0
        %904 = vmatprep.subr.mxu0 0.0
        %905 = vmatpush1.xpose.msra.mxu0 %v902
        %906 = vmatprep.subr.mxu0 0.0
        %907 = vmatpush1.xpose.msra.mxu0 0.0
        %908 = vmatprep.subr.mxu0 0.0
        %909 = vmatpush1.xpose.msra.mxu0 0.0
        %910 = vmatprep.subr.mxu0 0.0
        %911 = vmatpush1.xpose.msra.mxu0 0.0
        %912 = vmatprep.subr.mxu0 0.0
        %913 = vmatpush1.xpose.msra.mxu0 0.0
        %914 = vmatprep.subr.mxu0 0.0
        %915 = vmatpush1.xpose.msra.mxu0 0.0
        %916 = vmatprep.subr.mxu0 0.0
        %917 = vmatpush1.xpose.msra.mxu0 0.0
        %918 = vmatprep.subr.mxu0 0.0
        %919 = vmatpush1.xpose.msra.mxu0 0.0
        %920 = vmatprep.subr.mxu0 0.0
        %921 = vmatpush1.xpose.msra.mxu0 0.0
        %922 = vmatprep.subr.mxu0 0.0
        %923 = vmatpush1.xpose.msra.mxu0 0.0
        %924 = vmatprep.subr.mxu0 0.0
        %925 = vmatpush1.xpose.msra.mxu0 0.0
        %926 = vmatprep.subr.mxu0 0.0
        %927 = vmatpush1.xpose.msra.mxu0 0.0
        %928 = vmatprep.subr.mxu0 0.0
        %929 = vmatpush1.xpose.msra.mxu0 0.0
        %930 = vmatprep.subr.mxu0 0.0
        %931 = vmatpush1.xpose.msra.mxu0 0.0
        %932 = vmatprep.subr.mxu0 0.0
        %933 = vmatpush1.xpose.msra.mxu0 0.0
        %934 = vmatprep.subr.mxu0 0.0
        %935 = vmatpush1.xpose.msra.mxu0 0.0
        %936 = vmatprep.subr.mxu0 0.0
        %937 = vmatpush1.xpose.msra.mxu0 0.0
        %938 = vmatprep.subr.mxu0 0.0
        %939 = vmatpush1.xpose.msra.mxu0 0.0
        %940 = vmatprep.subr.mxu0 0.0
        %941 = vmatpush1.xpose.msra.mxu0 0.0
        %942 = vmatprep.subr.mxu0 0.0
        %943 = vmatpush1.xpose.msra.mxu0 0.0
        %944 = vmatprep.subr.mxu0 0.0
        %945 = vmatpush1.xpose.msra.mxu0 0.0
        %946 = vmatprep.subr.mxu0 0.0
        %947 = vmatpush1.xpose.msra.mxu0 0.0
        %948 = vmatprep.subr.mxu0 0.0
        %949 = vmatpush1.xpose.msra.mxu0 0.0
        %950 = vmatprep.subr.mxu0 0.0
        %951 = vmatpush1.xpose.msra.mxu0 0.0
        %952 = vmatprep.subr.mxu0 0.0
        %953 = vmatpush1.xpose.msra.mxu0 0.0
        %954 = vmatprep.subr.mxu0 0.0
        %955 = vmatpush1.xpose.msra.mxu0 0.0
        %956 = vmatprep.subr.mxu0 0.0
        %957 = vmatpush1.xpose.msra.mxu0 0.0
        %958 = vmatprep.subr.mxu0 0.0
        %959 = vmatpush1.xpose.msra.mxu0 0.0
        %960 = vmatprep.subr.mxu0 0.0
        %961 = vmatpush1.xpose.msra.mxu0 0.0
        %962 = vmatprep.subr.mxu0 0.0
        %963 = vmatpush1.xpose.msra.mxu0 0.0
        %964 = vmatprep.subr.mxu0 0.0
        %965 = vmatpush1.xpose.msra.mxu0 0.0
        %966 = vmatprep.subr.mxu0 0.0
        %967 = vmatpush1.xpose.msra.mxu0 0.0
        %968 = vmatprep.mubr.f32.mxu0 0.0
        %969 = vmatmul.mubr.f32.gmra.mrb[0].mxu0 %v899
        %v970 = vpop.f32.mrb[0].mxu0
        %v971 = vadd.f32 0.0, %v970
        %v972 = vpop.f32.mrb[0].mxu0
        %973 = vdwg.mxu0
        %s974 = scalar_lea.vmem [#allocation2], 24
        %v975 = vld [vmem:[%s974] sm:$0xff]
        %v976 = vsel %vm397, %v971, -inf
        %977 = vmax.xlane.f32.xlu0 %v976
        %v978 = vpop.xlane.xlu0 %977
        %v979 = vmax.f32 %v975, %v978
        %v980 = vsub.f32 %v975, %v979
        %v981 = vmul.f32 %v980, 1.442695
        %v982 = vpow.pop %v981
        %984 = vset.pattern.permute.xlu0 0
        %985 = vperm.xlu0 %984, %v979
        %v986 = vpop.permute.xlu0 %985
        %v988 = vsub.f32 %v971, %v986
        %v989 = vmul.f32 %v988, 1.442695
        %v990 = vpow.pop %v989
        %v992 = vsel %vm397, %v990, 0
        %994 = vmatprep.subr.mxu0 0.0
        %995 = vmatpush1.msra.mxu0 %v897
        %996 = vmatprep.subr.mxu0 0.0
        %997 = vmatpush1.msra.mxu0 0.0
        %998 = vmatprep.subr.mxu0 0.0
        %999 = vmatpush1.msra.mxu0 0.0
        %1000 = vmatprep.subr.mxu0 0.0
        %1001 = vmatpush1.msra.mxu0 0.0
        %1002 = vmatprep.subr.mxu0 0.0
        %1003 = vmatpush1.msra.mxu0 0.0
        %1004 = vmatprep.subr.mxu0 0.0
        %1005 = vmatpush1.msra.mxu0 0.0
        %1006 = vmatprep.subr.mxu0 0.0
        %1007 = vmatpush1.msra.mxu0 0.0
        %1008 = vmatprep.subr.mxu0 0.0
        %1009 = vmatpush1.msra.mxu0 0.0
        %1010 = vmatprep.subr.mxu0 0.0
        %1011 = vmatpush1.msra.mxu0 0.0
        %1012 = vmatprep.subr.mxu0 0.0
        %1013 = vmatpush1.msra.mxu0 0.0
        %1014 = vmatprep.subr.mxu0 0.0
        %1015 = vmatpush1.msra.mxu0 0.0
        %1016 = vmatprep.subr.mxu0 0.0
        %1017 = vmatpush1.msra.mxu0 0.0
        %1018 = vmatprep.subr.mxu0 0.0
        %1019 = vmatpush1.msra.mxu0 0.0
        %1020 = vmatprep.subr.mxu0 0.0
        %1021 = vmatpush1.msra.mxu0 0.0
        %1022 = vmatprep.subr.mxu0 0.0
        %1023 = vmatpush1.msra.mxu0 0.0
        %1024 = vmatprep.subr.mxu0 0.0
        %1025 = vmatpush1.msra.mxu0 0.0
        %1026 = vmatprep.subr.mxu0 0.0
        %1027 = vmatpush1.msra.mxu0 0.0
        %1028 = vmatprep.subr.mxu0 0.0
        %1029 = vmatpush1.msra.mxu0 0.0
        %1030 = vmatprep.subr.mxu0 0.0
        %1031 = vmatpush1.msra.mxu0 0.0
        %1032 = vmatprep.subr.mxu0 0.0
        %1033 = vmatpush1.msra.mxu0 0.0
        %1034 = vmatprep.subr.mxu0 0.0
        %1035 = vmatpush1.msra.mxu0 0.0
        %1036 = vmatprep.subr.mxu0 0.0
        %1037 = vmatpush1.msra.mxu0 0.0
        %1038 = vmatprep.subr.mxu0 0.0
        %1039 = vmatpush1.msra.mxu0 0.0
        %1040 = vmatprep.subr.mxu0 0.0
        %1041 = vmatpush1.msra.mxu0 0.0
        %1042 = vmatprep.subr.mxu0 0.0
        %1043 = vmatpush1.msra.mxu0 0.0
        %1044 = vmatprep.subr.mxu0 0.0
        %1045 = vmatpush1.msra.mxu0 0.0
        %1046 = vmatprep.subr.mxu0 0.0
        %1047 = vmatpush1.msra.mxu0 0.0
        %1048 = vmatprep.subr.mxu0 0.0
        %1049 = vmatpush1.msra.mxu0 0.0
        %1050 = vmatprep.subr.mxu0 0.0
        %1051 = vmatpush1.msra.mxu0 0.0
        %1052 = vmatprep.subr.mxu0 0.0
        %1053 = vmatpush1.msra.mxu0 0.0
        %1054 = vmatprep.subr.mxu0 0.0
        %1055 = vmatpush1.msra.mxu0 0.0
        %1056 = vmatprep.subr.mxu0 0.0
        %1057 = vmatpush1.msra.mxu0 0.0
        %1058 = vmatprep.mubr.f32.mxu0 0.0
        %1059 = vmatmul.mubr.f32.gmra.mrb[0].mxu0 %v992
        %v1060 = vpop.f32.mrb[0].mxu0
        %v1061 = vadd.f32 0.0, %v1060
        %v1062 = vpop.f32.mrb[0].mxu0
        %1063 = vdwg.mxu0
        %s1064 = scalar_lea.vmem [#allocation3], 24
        %v1065 = vld [vmem:[%s1064] sm:$0xff]
        %v1066 = vmul.f32 %v982, %v1065
        %1068 = vrot.lane.b32.xlu0 %v1061, 96
        %v1069 = vpop.permute.xlu0 %1068
        %v1071 = vadd.f32 %v1066, %v1069
        %1072 = vst.msk [vmem:[%s1064] sm:$0xff] %vm493, %v1071
        %s1073 = scalar_lea.vmem [#allocation4], 24
        %v1074 = vld [vmem:[%s1073] sm:$0xff]
        %1076 = vset.pattern.permute.xlu0 0
        %1077 = vperm.xlu0 %1076, %v982
        %v1078 = vpop.permute.xlu0 %1077
        %v1080 = vmul.f32 %v1078, %v1074
        %v1081 = vadd.f32 %v1080, %v1061
        %1082 = vst.msk [vmem:[%s1073] sm:$0xff] %vm319, %v1081
        %1083 = vst.msk [vmem:[%s974] sm:$0xff] %vm493, %v979
        // Predicated region
        $region49: #{tpu_custom_call.1} parent=31 // pred_check
          %p1084 = pneg %p297
        $region50: #{tpu_custom_call.1} parent=31 // pred_check_branch
          %1086 = sbr.rel (%p1084) target = $region52
        $region51: #{tpu_custom_call.1} parent=31 // pred_region
          %v1087 = vld [vmem:[#allocation4] sm:$0xff]
          %v1088 = vld [vmem:[#allocation3] sm:$0xff]
          %1090 = vset.pattern.permute.xlu0 0
          %1091 = vperm.xlu0 %1090, %v1088
          %v1092 = vpop.permute.xlu0 %1091
          %v1094 = vrcp.pop %v1092
          %v1095 = vmul.f32 %v1087, %v1094
          %v1097 = vcombine.high %v1095, %v1095
          %v1099 = vunpack.c.l.s4 1966171168
          %v1100 = vunpack.c.0.s8 %v1099
          %v1101 = vlaneseq
          %v1102 = vshrl.u32 %v1101, 7
          %v1103 = vsub.s32 %v1100, %v1102
          %v1104 = vrot.slane %v1095, %v1103
          %v1106 = vunpack.c.l.s4 1966171168
          %v1107 = vunpack.c.0.s8 %v1106
          %v1108 = vlaneseq
          %v1109 = vshrl.u32 %v1108, 7
          %v1110 = vsub.s32 %v1107, %v1109
          %v1111 = vrot.slane %v1097, %v1110
          %v1112 = vcombine.high %v1104, %v1104
          %v1113 = vcombine.high %v1111, %v1111
          %v1115 = vunpack.c.l.s4 1966171168
          %v1116 = vunpack.c.0.s8 %v1115
          %v1117 = vlaneseq
          %v1118 = vshrl.u32 %v1117, 7
          %v1119 = vsub.s32 %v1116, %v1118
          %v1120 = vrot.slane %v1104, %v1119
          %v1122 = vunpack.c.l.s4 1966171168
          %v1123 = vunpack.c.0.s8 %v1122
          %v1124 = vlaneseq
          %v1125 = vshrl.u32 %v1124, 7
          %v1126 = vsub.s32 %v1123, %v1125
          %v1127 = vrot.slane %v1111, %v1126
          %v1129 = vunpack.c.l.s4 1966171168
          %v1130 = vunpack.c.0.s8 %v1129
          %v1131 = vlaneseq
          %v1132 = vshrl.u32 %v1131, 7
          %v1133 = vsub.s32 %v1130, %v1132
          %v1134 = vrot.slane %v1112, %v1133
          %v1136 = vunpack.c.l.s4 1966171168
          %v1137 = vunpack.c.0.s8 %v1136
          %v1138 = vlaneseq
          %v1139 = vshrl.u32 %v1138, 7
          %v1140 = vsub.s32 %v1137, %v1139
          %v1141 = vrot.slane %v1113, %v1140
          %v1142 = vcombine.high %v1120, %v1120
          %v1143 = vcombine.high %v1127, %v1127
          %v1144 = vcombine.high %v1134, %v1134
          %v1145 = vcombine.high %v1141, %v1141
          %vm1154 = vcmask 253952
          %1155 = vst.msk [vmem:[%s295] sm:$0x1] %vm1154, %v1120
          %1156 = vst.msk [vmem:[%s295 + $0x4] sm:$0x1] %vm1154, %v1134
          %1157 = vst.msk [vmem:[%s295 + $0x8] sm:$0x1] %vm1154, %v1142
          %1158 = vst.msk [vmem:[%s295 + $0xc] sm:$0x1] %vm1154, %v1144
          %1159 = vst.msk [vmem:[%s295 + $0x10] sm:$0x1] %vm1154, %v1127
          %1160 = vst.msk [vmem:[%s295 + $0x14] sm:$0x1] %vm1154, %v1141
          %1161 = vst.msk [vmem:[%s295 + $0x18] sm:$0x1] %vm1154, %v1143
          %1162 = vst.msk [vmem:[%s295 + $0x1c] sm:$0x1] %vm1154, %v1145
          %v1163 = vld [vmem:[%s687] sm:$0xff]
          %v1164 = vld [vmem:[%s678] sm:$0xff]
          %1166 = vset.pattern.permute.xlu0 0
          %1167 = vperm.xlu0 %1166, %v1164
          %v1168 = vpop.permute.xlu0 %1167
          %v1170 = vrcp.pop %v1168
          %v1171 = vmul.f32 %v1163, %v1170
          %v1173 = vcombine.high %v1171, %v1171
          %v1175 = vunpack.c.l.s4 1966171168
          %v1176 = vunpack.c.0.s8 %v1175
          %v1177 = vlaneseq
          %v1178 = vshrl.u32 %v1177, 7
          %v1179 = vsub.s32 %v1176, %v1178
          %v1180 = vrot.slane %v1171, %v1179
          %v1182 = vunpack.c.l.s4 1966171168
          %v1183 = vunpack.c.0.s8 %v1182
          %v1184 = vlaneseq
          %v1185 = vshrl.u32 %v1184, 7
          %v1186 = vsub.s32 %v1183, %v1185
          %v1187 = vrot.slane %v1173, %v1186
          %v1188 = vcombine.high %v1180, %v1180
          %v1189 = vcombine.high %v1187, %v1187
          %v1191 = vunpack.c.l.s4 1966171168
          %v1192 = vunpack.c.0.s8 %v1191
          %v1193 = vlaneseq
          %v1194 = vshrl.u32 %v1193, 7
          %v1195 = vsub.s32 %v1192, %v1194
          %v1196 = vrot.slane %v1180, %v1195
          %v1198 = vunpack.c.l.s4 1966171168
          %v1199 = vunpack.c.0.s8 %v1198
          %v1200 = vlaneseq
          %v1201 = vshrl.u32 %v1200, 7
          %v1202 = vsub.s32 %v1199, %v1201
          %v1203 = vrot.slane %v1187, %v1202
          %v1205 = vunpack.c.l.s4 1966171168
          %v1206 = vunpack.c.0.s8 %v1205
          %v1207 = vlaneseq
          %v1208 = vshrl.u32 %v1207, 7
          %v1209 = vsub.s32 %v1206, %v1208
          %v1210 = vrot.slane %v1188, %v1209
          %v1212 = vunpack.c.l.s4 1966171168
          %v1213 = vunpack.c.0.s8 %v1212
          %v1214 = vlaneseq
          %v1215 = vshrl.u32 %v1214, 7
          %v1216 = vsub.s32 %v1213, %v1215
          %v1217 = vrot.slane %v1189, %v1216
          %v1218 = vcombine.high %v1196, %v1196
          %v1219 = vcombine.high %v1203, %v1203
          %v1220 = vcombine.high %v1210, %v1210
          %v1221 = vcombine.high %v1217, %v1217
          %1230 = vst.msk [vmem:[%s295 + $0x1] sm:$0x1] %vm1154, %v1196
          %1231 = vst.msk [vmem:[%s295 + $0x5] sm:$0x1] %vm1154, %v1210
          %1232 = vst.msk [vmem:[%s295 + $0x9] sm:$0x1] %vm1154, %v1218
          %1233 = vst.msk [vmem:[%s295 + $0xd] sm:$0x1] %vm1154, %v1220
          %1234 = vst.msk [vmem:[%s295 + $0x11] sm:$0x1] %vm1154, %v1203
          %1235 = vst.msk [vmem:[%s295 + $0x15] sm:$0x1] %vm1154, %v1217
          %1236 = vst.msk [vmem:[%s295 + $0x19] sm:$0x1] %vm1154, %v1219
          %1237 = vst.msk [vmem:[%s295 + $0x1d] sm:$0x1] %vm1154, %v1221
          %v1238 = vld [vmem:[%s880] sm:$0xff]
          %v1239 = vld [vmem:[%s871] sm:$0xff]
          %1241 = vset.pattern.permute.xlu0 0
          %1242 = vperm.xlu0 %1241, %v1239
          %v1243 = vpop.permute.xlu0 %1242
          %v1245 = vrcp.pop %v1243
          %v1246 = vmul.f32 %v1238, %v1245
          %v1248 = vcombine.high %v1246, %v1246
          %v1250 = vunpack.c.l.s4 1966171168
          %v1251 = vunpack.c.0.s8 %v1250
          %v1252 = vlaneseq
          %v1253 = vshrl.u32 %v1252, 7
          %v1254 = vsub.s32 %v1251, %v1253
          %v1255 = vrot.slane %v1246, %v1254
          %v1257 = vunpack.c.l.s4 1966171168
          %v1258 = vunpack.c.0.s8 %v1257
          %v1259 = vlaneseq
          %v1260 = vshrl.u32 %v1259, 7
          %v1261 = vsub.s32 %v1258, %v1260
          %v1262 = vrot.slane %v1248, %v1261
          %v1263 = vcombine.high %v1255, %v1255
          %v1264 = vcombine.high %v1262, %v1262
          %v1266 = vunpack.c.l.s4 1966171168
          %v1267 = vunpack.c.0.s8 %v1266
          %v1268 = vlaneseq
          %v1269 = vshrl.u32 %v1268, 7
          %v1270 = vsub.s32 %v1267, %v1269
          %v1271 = vrot.slane %v1255, %v1270
          %v1273 = vunpack.c.l.s4 1966171168
          %v1274 = vunpack.c.0.s8 %v1273
          %v1275 = vlaneseq
          %v1276 = vshrl.u32 %v1275, 7
          %v1277 = vsub.s32 %v1274, %v1276
          %v1278 = vrot.slane %v1262, %v1277
          %v1280 = vunpack.c.l.s4 1966171168
          %v1281 = vunpack.c.0.s8 %v1280
          %v1282 = vlaneseq
          %v1283 = vshrl.u32 %v1282, 7
          %v1284 = vsub.s32 %v1281, %v1283
          %v1285 = vrot.slane %v1263, %v1284
          %v1287 = vunpack.c.l.s4 1966171168
          %v1288 = vunpack.c.0.s8 %v1287
          %v1289 = vlaneseq
          %v1290 = vshrl.u32 %v1289, 7
          %v1291 = vsub.s32 %v1288, %v1290
          %v1292 = vrot.slane %v1264, %v1291
          %v1293 = vcombine.high %v1271, %v1271
          %v1294 = vcombine.high %v1278, %v1278
          %v1295 = vcombine.high %v1285, %v1285
          %v1296 = vcombine.high %v1292, %v1292
          %1305 = vst.msk [vmem:[%s295 + $0x2] sm:$0x1] %vm1154, %v1271
          %1306 = vst.msk [vmem:[%s295 + $0x6] sm:$0x1] %vm1154, %v1285
          %1307 = vst.msk [vmem:[%s295 + $0xa] sm:$0x1] %vm1154, %v1293
          %1308 = vst.msk [vmem:[%s295 + $0xe] sm:$0x1] %vm1154, %v1295
          %1309 = vst.msk [vmem:[%s295 + $0x12] sm:$0x1] %vm1154, %v1278
          %1310 = vst.msk [vmem:[%s295 + $0x16] sm:$0x1] %vm1154, %v1292
          %1311 = vst.msk [vmem:[%s295 + $0x1a] sm:$0x1] %vm1154, %v1294
          %1312 = vst.msk [vmem:[%s295 + $0x1e] sm:$0x1] %vm1154, %v1296
          %v1313 = vld [vmem:[%s1073] sm:$0xff]
          %v1314 = vld [vmem:[%s1064] sm:$0xff]
          %1316 = vset.pattern.permute.xlu0 0
          %1317 = vperm.xlu0 %1316, %v1314
          %v1318 = vpop.permute.xlu0 %1317
          %v1320 = vrcp.pop %v1318
          %v1321 = vmul.f32 %v1313, %v1320
          %v1323 = vcombine.high %v1321, %v1321
          %v1325 = vunpack.c.l.s4 1966171168
          %v1326 = vunpack.c.0.s8 %v1325
          %v1327 = vlaneseq
          %v1328 = vshrl.u32 %v1327, 7
          %v1329 = vsub.s32 %v1326, %v1328
          %v1330 = vrot.slane %v1321, %v1329
          %v1332 = vunpack.c.l.s4 1966171168
          %v1333 = vunpack.c.0.s8 %v1332
          %v1334 = vlaneseq
          %v1335 = vshrl.u32 %v1334, 7
          %v1336 = vsub.s32 %v1333, %v1335
          %v1337 = vrot.slane %v1323, %v1336
          %v1338 = vcombine.high %v1330, %v1330
          %v1339 = vcombine.high %v1337, %v1337
          %v1341 = vunpack.c.l.s4 1966171168
          %v1342 = vunpack.c.0.s8 %v1341
          %v1343 = vlaneseq
          %v1344 = vshrl.u32 %v1343, 7
          %v1345 = vsub.s32 %v1342, %v1344
          %v1346 = vrot.slane %v1330, %v1345
          %v1348 = vunpack.c.l.s4 1966171168
          %v1349 = vunpack.c.0.s8 %v1348
          %v1350 = vlaneseq
          %v1351 = vshrl.u32 %v1350, 7
          %v1352 = vsub.s32 %v1349, %v1351
          %v1353 = vrot.slane %v1337, %v1352
          %v1355 = vunpack.c.l.s4 1966171168
          %v1356 = vunpack.c.0.s8 %v1355
          %v1357 = vlaneseq
          %v1358 = vshrl.u32 %v1357, 7
          %v1359 = vsub.s32 %v1356, %v1358
          %v1360 = vrot.slane %v1338, %v1359
          %v1362 = vunpack.c.l.s4 1966171168
          %v1363 = vunpack.c.0.s8 %v1362
          %v1364 = vlaneseq
          %v1365 = vshrl.u32 %v1364, 7
          %v1366 = vsub.s32 %v1363, %v1365
          %v1367 = vrot.slane %v1339, %v1366
          %v1368 = vcombine.high %v1346, %v1346
          %v1369 = vcombine.high %v1353, %v1353
          %v1370 = vcombine.high %v1360, %v1360
          %v1371 = vcombine.high %v1367, %v1367
          %1380 = vst.msk [vmem:[%s295 + $0x3] sm:$0x1] %vm1154, %v1346
          %1381 = vst.msk [vmem:[%s295 + $0x7] sm:$0x1] %vm1154, %v1360
          %1382 = vst.msk [vmem:[%s295 + $0xb] sm:$0x1] %vm1154, %v1368
          %1383 = vst.msk [vmem:[%s295 + $0xf] sm:$0x1] %vm1154, %v1370
          %1384 = vst.msk [vmem:[%s295 + $0x13] sm:$0x1] %vm1154, %v1353
          %1385 = vst.msk [vmem:[%s295 + $0x17] sm:$0x1] %vm1154, %v1367
          %1386 = vst.msk [vmem:[%s295 + $0x1b] sm:$0x1] %vm1154, %v1369
          %1387 = vst.msk [vmem:[%s295 + $0x1f] sm:$0x1] %vm1154, %v1371
        $region52: #{tpu_custom_call.1} parent=31 // pred_fallthru
          _
        %s1388 = sand.u32 %s136, 1
        %s1389 = scalar_lea.sflag [#allocation7], %s1388
        %s1390 = sand.u32 %s136, 1
        %s1391 = smul.addr %s1390, 32
        %s1392 = scalar_lea.vmem [#allocation11], %s1391
        // Predicated region
        $region53: #{tpu_custom_call.1} parent=31 // pred_check
          %p1393 = pneg %p146
        $region54: #{tpu_custom_call.1} parent=31 // pred_check_branch
          %1395 = sbr.rel (%p1393) target = $region56
        $region55: #{tpu_custom_call.1} parent=31 // pred_region
          %s1396 = smul.u32 8, %s29
          %s1398 = ssub.s32 512, 512
          %1399 = vsyncadd %s1389, %s1398
          %s1400 = smul.addr %s28, 8
          %s1401 = sadd.s32 %s1396, %s1400
          %s1402 = smul.addr %s1401, 64
          %s1403 = scalar_lea.hbm %s3, %s1402
          %s1404 = sshll.u32 %s1392, 4
          %s1405 = int_to_ptr.vmem [resolvable:$true] %s1404
          %1410 = dma.vmem_to_hbm [thread:$0]  %s1405, 512, %s1403, %s1389, 64, 64, 4
        $region56: #{tpu_custom_call.1} parent=31 // pred_fallthru
          _
      $region32: #{tpu_custom_call.1} parent=5 // pred_fallthru
        _
      %p1411 = scmp.le.s32.totalorder 2, %s18
      // Predicated region
      $region57: #{tpu_custom_call.1} parent=5 // pred_check
        %p1412 = pneg %p1411
      $region58: #{tpu_custom_call.1} parent=5 // pred_check_branch
        %1414 = sbr.rel (%p1412) target = $region60
      $region59: #{tpu_custom_call.1} parent=5 // pred_region
        %s1415 = ssub.s32 %s18, 2
        // Predicated region
        $region61: #{tpu_custom_call.1} parent=59 // pred_check
          %p1416 = pneg %p152
        $region62: #{tpu_custom_call.1} parent=59 // pred_check_branch
          %1418 = sbr.rel (%p1416) target = $region64
        $region63: #{tpu_custom_call.1} parent=59 // pred_region
          %s1419 = sand.u32 %s137, 1
          %s1420 = scalar_lea.sflag [#allocation7], %s1419
          %s1421 = sand.u32 %s137, 1
          %s1422 = smul.addr %s1421, 32
          %s1423 = scalar_lea.vmem [#allocation11], %s1422
          %1424 = dma.done %s1420, 512
        $region64: #{tpu_custom_call.1} parent=59 // pred_fallthru
          _
      $region60: #{tpu_custom_call.1} parent=5 // pred_fallthru
        _
    $region6: #{tpu_custom_call.1} parent=1 // loop_footer
      %s22 = sadd.s32 1, %s18
    $region7: #{tpu_custom_call.1} parent=1 // loop_footer_branch
      %17 = sbr.rel target = $region3
    $region8: #{tpu_custom_call.1} parent=1 // loop_exit
      _
    %1425 = vsyncpa [#allocation6], 1
    %s1426 = scalar_lea.sflag [#allocation6], 1
    %1427 = vsyncpa %s1426, 1
    %1428 = vsyncpa [#allocation9], 1
    %s1429 = scalar_lea.sflag [#allocation9], 1
    %1430 = vsyncpa %s1429, 1
    %1431 = vsyncpa [#allocation7], 1
    %s1432 = scalar_lea.sflag [#allocation7], 1
    %1433 = vsyncpa %s1432, 1

</llo_original>
